<compile_context>
chip_gen: v5e
topology: v5e:2x2
jax: 0.10.0
libtpu: 0.0.40
codegen_flags: <defaults>
</compile_context>

<pallas_src>
import functools

import jax
import jax.numpy as jnp
import numpy as np
from jax.experimental import pallas as pl
from jax.experimental.pallas import tpu as pltpu

# ---- LIF constants (LIFLayer defaults); tau computed in f32 like torch does ----
ALPHA = 0.9
BETA = 0.85
ALPHARP = 0.65
WRP = 1.0
TAU_M = float(np.float32(1.0) / (np.float32(1.0) - np.float32(ALPHA)))  # 1/(1-alpha)
TAU_S = float(np.float32(1.0) / (np.float32(1.0) - np.float32(BETA)))   # 1/(1-beta)


# ----------------------------------------------------------------------------
# Kernel: one grid step = TB consecutive LIF timesteps.
# ----------------------------------------------------------------------------
def _lif_block_kernel(*refs, tb_steps, batch, has_ucon, mxu_dtype):
    if has_ucon:
        (sin_ref, ucon_ref, w_ref, b_ref,
         p0_ref, q0_ref, r0_ref, s0_ref,
         s_seq_ref, u_seq_ref, pF_ref, qF_ref, rF_ref, sF_ref,
         p_trace_ref) = refs
    else:
        (sin_ref, w_ref, b_ref,
         p0_ref, q0_ref, r0_ref, s0_ref,
         s_seq_ref, u_seq_ref, pF_ref, qF_ref, rF_ref, sF_ref,
         p_trace_ref) = refs
        ucon_ref = None

    tb = pl.program_id(0)

    # Load the initial state into the resident state accumulators once.
    @pl.when(tb == 0)
    def _init():
        pF_ref[...] = p0_ref[...]
        qF_ref[...] = q0_ref[...]
        rF_ref[...] = r0_ref[...]
        sF_ref[...] = s0_ref[...]

    # ---- Phase 1: elementwise P/Q trace scan over the TB steps (VPU only). ----
    p = pF_ref[...]
    q = qF_ref[...]
    for i in range(tb_steps):
        p_new = ALPHA * p + TAU_M * q              # uses the OLD Q, as in torch
        q_new = BETA * q + TAU_S * sin_ref[i]
        p_trace_ref[i * batch:(i + 1) * batch, :] = p_new
        p, q = p_new, q_new
    pF_ref[...] = p
    qF_ref[...] = q

    # ---- Phase 2: ONE MXU GEMM for the whole time block. ----
    # (TB*B, n_in) @ (n_in, n_out), f32 accumulation, bf16 operands.
    u_base = jnp.dot(p_trace_ref[...].astype(mxu_dtype), w_ref[...],
                     preferred_element_type=jnp.float32) + b_ref[...]

    # ---- Phase 3: sequential R/U/S scan (elementwise + threshold). ----
    r = rF_ref[...]
    s = sF_ref[...]
    for i in range(tb_steps):
        r = ALPHARP * r - WRP * s
        u = u_base[i * batch:(i + 1) * batch, :] + r
        if has_ucon:
            u = u + ucon_ref[i]
        s = (u > 0.0).astype(jnp.float32)
        u_seq_ref[i] = u
        s_seq_ref[i] = s
    rF_ref[...] = r
    sF_ref[...] = s


def _pick_time_block(T, cap=32):
    """Largest divisor of T that is <= cap (timesteps per grid step)."""
    tb = 1
    for d in range(1, min(T, cap) + 1):
        if T % d == 0:
            tb = d
    return tb


def _estimate_vmem_bytes(TB, B, n_in, n_out, w_itemsize, has_ucon):
    f32 = 4
    stream_in = 2 * TB * B * n_in * f32
    if has_ucon:
        stream_in += 2 * TB * B * n_out * f32
    stream_out = 2 * 2 * TB * B * n_out * f32            # S_seq + U_seq, double-buffered
    weights = 2 * (n_in * n_out * w_itemsize + n_out * f32)
    state = 2 * 2 * B * (n_in + n_out) * f32              # init inputs + resident outputs
    scratch = TB * B * n_in * f32
    return stream_in + stream_out + weights + state + scratch


def lif_forward_sequence(sin, w, b, u_connect=None, state=None,
                         time_block=None, mxu_dtype=jnp.bfloat16):
    """Run T sequential LIFLayer.forward steps in one fused Pallas kernel.

    sin       : [T, B, n_in]  input spikes Sin_t
    w, b      : [n_in, n_out], [1, n_out] (or [n_out]) linear base_layer params
    u_connect : [T, B, n_out] or None (None => the `+ U_connect` term is omitted,
                no zero tensor is streamed)
    state     : (P, Q, R, S) or None (zero-init, as LIFLayer.init_state)
    mxu_dtype : dtype of the matmul operands (bf16 by default; f32 accumulation)

    Returns (S_seq [T,B,n_out], U_seq [T,B,n_out]), final state (P, Q, R, S).
    """
    T, B, n_in = sin.shape
    n_out = w.shape[-1]

    sin = sin.astype(jnp.float32)
    w_mxu = w.astype(mxu_dtype)
    b = jnp.reshape(b, (1, n_out)).astype(jnp.float32)

    if state is None:
        state = (jnp.zeros((B, n_in), jnp.float32),    # P
                 jnp.zeros((B, n_in), jnp.float32),    # Q
                 jnp.zeros((B, n_out), jnp.float32),   # R
                 jnp.zeros((B, n_out), jnp.float32))   # S
    p0, q0, r0, s0 = (x.astype(jnp.float32) for x in state)

    has_ucon = u_connect is not None
    if has_ucon:
        u_connect = u_connect.astype(jnp.float32)

    TB = _pick_time_block(T) if time_block is None else int(time_block)
    assert T % TB == 0, "time_block must divide T"
    grid = (T // TB,)

    kernel = functools.partial(_lif_block_kernel, tb_steps=TB, batch=B,
                               has_ucon=has_ucon, mxu_dtype=mxu_dtype)

    # Streamed per-block inputs (full-array dims on the trailing axes => no pads).
    in_specs = [pl.BlockSpec((TB, B, n_in), lambda t: (t, 0, 0))]          # Sin block
    inputs = [sin]
    if has_ucon:
        in_specs.append(pl.BlockSpec((TB, B, n_out), lambda t: (t, 0, 0)))  # U_connect block
        inputs.append(u_connect)
    # Resident inputs (constant index_map -> DMA'd once, stay in VMEM).
    in_specs += [
        pl.BlockSpec((n_in, n_out), lambda t: (0, 0)),   # W  (bf16)
        pl.BlockSpec((1, n_out), lambda t: (0, 0)),      # b
        pl.BlockSpec((B, n_in), lambda t: (0, 0)),       # P0
        pl.BlockSpec((B, n_in), lambda t: (0, 0)),       # Q0
        pl.BlockSpec((B, n_out), lambda t: (0, 0)),      # R0
        pl.BlockSpec((B, n_out), lambda t: (0, 0)),      # S0
    ]
    inputs += [w_mxu, b, p0, q0, r0, s0]

    out_shape = (
        jax.ShapeDtypeStruct((T, B, n_out), jnp.float32),  # S sequence
        jax.ShapeDtypeStruct((T, B, n_out), jnp.float32),  # U sequence
        jax.ShapeDtypeStruct((B, n_in), jnp.float32),      # final P
        jax.ShapeDtypeStruct((B, n_in), jnp.float32),      # final Q
        jax.ShapeDtypeStruct((B, n_out), jnp.float32),     # final R
        jax.ShapeDtypeStruct((B, n_out), jnp.float32),     # final S
    )
    out_specs = (
        pl.BlockSpec((TB, B, n_out), lambda t: (t, 0, 0)),  # S block
        pl.BlockSpec((TB, B, n_out), lambda t: (t, 0, 0)),  # U block
        pl.BlockSpec((B, n_in), lambda t: (0, 0)),          # final P (resident accumulator)
        pl.BlockSpec((B, n_in), lambda t: (0, 0)),          # final Q
        pl.BlockSpec((B, n_out), lambda t: (0, 0)),         # final R
        pl.BlockSpec((B, n_out), lambda t: (0, 0)),         # final S
    )

    # Raise the scoped-VMEM limit only when the resident + streamed footprint
    # might exceed the smallest default (v5e ~16 MiB); demo shapes use defaults.
    params = dict(dimension_semantics=("arbitrary",))       # time is sequential
    est = _estimate_vmem_bytes(TB, B, n_in, n_out, np.dtype(mxu_dtype).itemsize, has_ucon)
    if est > 12 * 1024 * 1024:
        params["vmem_limit_bytes"] = min(int(1.5 * est) + (4 << 20), 100 * 1024 * 1024)

    s_seq, u_seq, pF, qF, rF, sF = pl.pallas_call(
        kernel,
        out_shape=out_shape,
        grid=grid,
        in_specs=in_specs,
        out_specs=out_specs,
        scratch_shapes=[pltpu.VMEM((TB * B, n_in), jnp.float32)],  # P trace for the block GEMM
        compiler_params=pltpu.CompilerParams(**params),
    )(*inputs)

    return (s_seq, u_seq), (pF, qF, rF, sF)


# ----------------------------------------------------------------------------
# Pure-JAX reference (direct transcription of LIFLayer.forward) using the same
# MXU-operand dtype so the comparison is apples-to-apples.
# ----------------------------------------------------------------------------
def lif_reference(sin, w, b, u_connect=None, mxu_dtype=jnp.bfloat16):
    T, B, n_in = sin.shape
    n_out = w.shape[-1]
    b = jnp.reshape(b, (1, n_out)).astype(jnp.float32)
    w_m = w.astype(mxu_dtype)
    P = jnp.zeros((B, n_in), jnp.float32)
    Q = jnp.zeros((B, n_in), jnp.float32)
    R = jnp.zeros((B, n_out), jnp.float32)
    S = jnp.zeros((B, n_out), jnp.float32)
    s_seq, u_seq = [], []
    for t in range(T):
        Qn = BETA * Q + TAU_S * sin[t]
        Pn = ALPHA * P + TAU_M * Q
        Rn = ALPHARP * R - WRP * S
        U = (jnp.dot(Pn.astype(mxu_dtype), w_m, preferred_element_type=jnp.float32)
             + b + Rn)
        if u_connect is not None:
            U = U + u_connect[t]
        Sn = (U > 0.0).astype(jnp.float32)
        P, Q, R, S = Pn, Qn, Rn, Sn
        s_seq.append(Sn)
        u_seq.append(U)
    return jnp.stack(s_seq), jnp.stack(u_seq), (P, Q, R, S)


if __name__ == "__main__":
    T, batch, n_in, n_out = 8, 2, 16, 32

    key = jax.random.PRNGKey(0)
    k_sin, k_w, k_b, k_uc = jax.random.split(key, 4)

    # Spike-like binary inputs, Linear base-layer params, small connection drive.
    sin = (jax.random.uniform(k_sin, (T, batch, n_in)) < 0.3).astype(jnp.float32)
    stdv = 1.0 / (float(n_in) ** 0.5)
    w = jax.random.uniform(k_w, (n_in, n_out), jnp.float32, -stdv, stdv)
    b = jax.random.uniform(k_b, (1, n_out), jnp.float32, -1e-3, 1e-3)
    u_connect = 0.1 * jax.random.normal(k_uc, (T, batch, n_out), jnp.float32)

    # --- with U_connect ---
    (s_seq, u_seq), (pF, qF, rF, sF) = lif_forward_sequence(sin, w, b, u_connect)
    jax.block_until_ready((s_seq, u_seq, pF, qF, rF, sF))

    s_ref, u_ref, (p_ref, q_ref, r_ref, s_ref_final) = lif_reference(sin, w, b, u_connect)

    assert s_seq.shape == (T, batch, n_out)
    assert u_seq.shape == (T, batch, n_out)
    assert pF.shape == (batch, n_in) and qF.shape == (batch, n_in)
    assert rF.shape == (batch, n_out) and sF.shape == (batch, n_out)
    assert bool(jnp.all(jnp.isfinite(u_seq)))

    # P/Q traces are pure f32 elementwise recurrences (no matmul / no threshold
    # feedback) -> tight agreement with the reference.
    assert jnp.allclose(pF, p_ref, rtol=1e-5, atol=1e-5)
    assert jnp.allclose(qF, q_ref, rtol=1e-5, atol=1e-5)
    # U/S: both sides use the same bf16-operand / f32-accumulate matmul, so the
    # early steps agree closely (later steps can diverge only via a marginal
    # spike flip at U ~ 0, which then cascades through R).
    assert jnp.allclose(u_seq[:3], u_ref[:3], rtol=1e-3, atol=1e-3)
    assert jnp.array_equal(s_seq[:2], s_ref[:2])

    # --- without U_connect (no zero tensor is streamed in this path) ---
    (s_seq2, u_seq2), (pF2, qF2, rF2, sF2) = lif_forward_sequence(sin, w, b)
    jax.block_until_ready((s_seq2, u_seq2, pF2, qF2, rF2, sF2))
    s_ref2, u_ref2, (p_ref2, q_ref2, _, _) = lif_reference(sin, w, b, None)
    assert jnp.allclose(pF2, p_ref2, rtol=1e-5, atol=1e-5)
    assert jnp.allclose(qF2, q_ref2, rtol=1e-5, atol=1e-5)
    assert jnp.allclose(u_seq2[:3], u_ref2[:3], rtol=1e-3, atol=1e-3)
    assert bool(jnp.all(jnp.isfinite(u_seq2)))

    print("KERNEL_OK")
</pallas_src>

<mosaic_0001>
module attributes {stable_mosaic.version = 11 : i64} {
  func.func @_lif_block_kernel(%arg0: i32, %arg1: memref<8x2x16xf32, #tpu.memory_space<vmem>>, %arg2: memref<8x2x32xf32, #tpu.memory_space<vmem>>, %arg3: memref<16x32xbf16, #tpu.memory_space<vmem>>, %arg4: memref<1x32xf32, #tpu.memory_space<vmem>>, %arg5: memref<2x16xf32, #tpu.memory_space<vmem>>, %arg6: memref<2x16xf32, #tpu.memory_space<vmem>>, %arg7: memref<2x32xf32, #tpu.memory_space<vmem>>, %arg8: memref<2x32xf32, #tpu.memory_space<vmem>>, %arg9: memref<8x2x32xf32, #tpu.memory_space<vmem>>, %arg10: memref<8x2x32xf32, #tpu.memory_space<vmem>>, %arg11: memref<2x16xf32, #tpu.memory_space<vmem>>, %arg12: memref<2x16xf32, #tpu.memory_space<vmem>>, %arg13: memref<2x32xf32, #tpu.memory_space<vmem>>, %arg14: memref<2x32xf32, #tpu.memory_space<vmem>>, %arg15: memref<16x16xf32, #tpu.memory_space<vmem>>) attributes {dimension_semantics = [#tpu.dimension_semantics<arbitrary>], iteration_bounds = array<i64: 1>, scalar_prefetch = 0 : i64, scratch_operands = 1 : i64, tpu.core_type = #tpu.core_type<tc>, window_params = [{transform_indices = @transform_0, window_bounds = array<i64: 8, 2, 16>}, {transform_indices = @transform_1, window_bounds = array<i64: 8, 2, 32>}, {pipeline_mode = #tpu.pipeline_mode<synchronous>, transform_indices = @transform_2, window_bounds = array<i64: 16, 32>}, {pipeline_mode = #tpu.pipeline_mode<synchronous>, transform_indices = @transform_3, window_bounds = array<i64: 1, 32>}, {pipeline_mode = #tpu.pipeline_mode<synchronous>, transform_indices = @transform_4, window_bounds = array<i64: 2, 16>}, {pipeline_mode = #tpu.pipeline_mode<synchronous>, transform_indices = @transform_5, window_bounds = array<i64: 2, 16>}, {pipeline_mode = #tpu.pipeline_mode<synchronous>, transform_indices = @transform_6, window_bounds = array<i64: 2, 32>}, {pipeline_mode = #tpu.pipeline_mode<synchronous>, transform_indices = @transform_7, window_bounds = array<i64: 2, 32>}, {transform_indices = @transform_8, window_bounds = array<i64: 8, 2, 32>}, {transform_indices = @transform_9, window_bounds = array<i64: 8, 2, 32>}, {pipeline_mode = #tpu.pipeline_mode<synchronous>, transform_indices = @transform_10, window_bounds = array<i64: 2, 16>}, {pipeline_mode = #tpu.pipeline_mode<synchronous>, transform_indices = @transform_11, window_bounds = array<i64: 2, 16>}, {pipeline_mode = #tpu.pipeline_mode<synchronous>, transform_indices = @transform_12, window_bounds = array<i64: 2, 32>}, {pipeline_mode = #tpu.pipeline_mode<synchronous>, transform_indices = @transform_13, window_bounds = array<i64: 2, 32>}]} {
    %c0_i32 = arith.constant 0 : i32
    %0 = arith.cmpi eq, %arg0, %c0_i32 : i32
    %1 = arith.extui %0 : i1 to i32
    %c0_i32_0 = arith.constant 0 : i32
    %2 = arith.cmpi ne, %1, %c0_i32_0 : i32
    scf.if %2 {
      %c0_179 = arith.constant 0 : index
      %c0_180 = arith.constant 0 : index
      %282 = vector.load %arg5[%c0_179, %c0_180] : memref<2x16xf32, #tpu.memory_space<vmem>>, vector<2x16xf32>
      %c0_181 = arith.constant 0 : index
      %c0_182 = arith.constant 0 : index
      %283 = vector.load %arg11[%c0_181, %c0_182] : memref<2x16xf32, #tpu.memory_space<vmem>>, vector<2x16xf32>
      tpu.vector_store %arg11[%c0_181, %c0_182], %282 {strides = array<i32>} : memref<2x16xf32, #tpu.memory_space<vmem>>, vector<2x16xf32>,
      %c0_183 = arith.constant 0 : index
      %c0_184 = arith.constant 0 : index
      %284 = vector.load %arg6[%c0_183, %c0_184] : memref<2x16xf32, #tpu.memory_space<vmem>>, vector<2x16xf32>
      %c0_185 = arith.constant 0 : index
      %c0_186 = arith.constant 0 : index
      %285 = vector.load %arg12[%c0_185, %c0_186] : memref<2x16xf32, #tpu.memory_space<vmem>>, vector<2x16xf32>
      tpu.vector_store %arg12[%c0_185, %c0_186], %284 {strides = array<i32>} : memref<2x16xf32, #tpu.memory_space<vmem>>, vector<2x16xf32>,
      %c0_187 = arith.constant 0 : index
      %c0_188 = arith.constant 0 : index
      %286 = vector.load %arg7[%c0_187, %c0_188] : memref<2x32xf32, #tpu.memory_space<vmem>>, vector<2x32xf32>
      %c0_189 = arith.constant 0 : index
      %c0_190 = arith.constant 0 : index
      %287 = vector.load %arg13[%c0_189, %c0_190] : memref<2x32xf32, #tpu.memory_space<vmem>>, vector<2x32xf32>
      tpu.vector_store %arg13[%c0_189, %c0_190], %286 {strides = array<i32>} : memref<2x32xf32, #tpu.memory_space<vmem>>, vector<2x32xf32>,
      %c0_191 = arith.constant 0 : index
      %c0_192 = arith.constant 0 : index
      %288 = vector.load %arg8[%c0_191, %c0_192] : memref<2x32xf32, #tpu.memory_space<vmem>>, vector<2x32xf32>
      %c0_193 = arith.constant 0 : index
      %c0_194 = arith.constant 0 : index
      %289 = vector.load %arg14[%c0_193, %c0_194] : memref<2x32xf32, #tpu.memory_space<vmem>>, vector<2x32xf32>
      tpu.vector_store %arg14[%c0_193, %c0_194], %288 {strides = array<i32>} : memref<2x32xf32, #tpu.memory_space<vmem>>, vector<2x32xf32>,
    } else {
    }
    %c0 = arith.constant 0 : index
    %c0_1 = arith.constant 0 : index
    %3 = vector.load %arg11[%c0, %c0_1] : memref<2x16xf32, #tpu.memory_space<vmem>>, vector<2x16xf32>
    %c0_2 = arith.constant 0 : index
    %c0_3 = arith.constant 0 : index
    %4 = vector.load %arg12[%c0_2, %c0_3] : memref<2x16xf32, #tpu.memory_space<vmem>>, vector<2x16xf32>
    %cst = arith.constant 0.899999976 : f32
    %5 = vector.broadcast %cst : f32 to vector<2x16xf32>
    %6 = arith.mulf %5, %3 : vector<2x16xf32>
    %cst_4 = arith.constant 9.99999809 : f32
    %7 = vector.broadcast %cst_4 : f32 to vector<2x16xf32>
    %8 = arith.mulf %7, %4 : vector<2x16xf32>
    %9 = arith.addf %6, %8 : vector<2x16xf32>
    %cst_5 = arith.constant 8.500000e-01 : f32
    %10 = vector.broadcast %cst_5 : f32 to vector<2x16xf32>
    %11 = arith.mulf %10, %4 : vector<2x16xf32>
    %c0_6 = arith.constant 0 : index
    %c0_7 = arith.constant 0 : index
    %c0_8 = arith.constant 0 : index
    %12 = vector.load %arg1[%c0_6, %c0_7, %c0_8] : memref<8x2x16xf32, #tpu.memory_space<vmem>>, vector<1x2x16xf32>
    %13 = vector.shape_cast %12 : vector<1x2x16xf32> to vector<2x16xf32>
    %cst_9 = arith.constant 6.66666794 : f32
    %14 = vector.broadcast %cst_9 : f32 to vector<2x16xf32>
    %15 = arith.mulf %14, %13 : vector<2x16xf32>
    %16 = arith.addf %11, %15 : vector<2x16xf32>
    %c0_10 = arith.constant 0 : index
    %c0_11 = arith.constant 0 : index
    %17 = vector.load %arg15[%c0_10, %c0_11] : memref<16x16xf32, #tpu.memory_space<vmem>>, vector<2x16xf32>
    tpu.vector_store %arg15[%c0_10, %c0_11], %9 {strides = array<i32>} : memref<16x16xf32, #tpu.memory_space<vmem>>, vector<2x16xf32>,
    %cst_12 = arith.constant 0.899999976 : f32
    %18 = vector.broadcast %cst_12 : f32 to vector<2x16xf32>
    %19 = arith.mulf %18, %9 : vector<2x16xf32>
    %cst_13 = arith.constant 9.99999809 : f32
    %20 = vector.broadcast %cst_13 : f32 to vector<2x16xf32>
    %21 = arith.mulf %20, %16 : vector<2x16xf32>
    %22 = arith.addf %19, %21 : vector<2x16xf32>
    %cst_14 = arith.constant 8.500000e-01 : f32
    %23 = vector.broadcast %cst_14 : f32 to vector<2x16xf32>
    %24 = arith.mulf %23, %16 : vector<2x16xf32>
    %c1 = arith.constant 1 : index
    %c0_15 = arith.constant 0 : index
    %c0_16 = arith.constant 0 : index
    %25 = vector.load %arg1[%c1, %c0_15, %c0_16] : memref<8x2x16xf32, #tpu.memory_space<vmem>>, vector<1x2x16xf32>
    %26 = vector.shape_cast %25 : vector<1x2x16xf32> to vector<2x16xf32>
    %cst_17 = arith.constant 6.66666794 : f32
    %27 = vector.broadcast %cst_17 : f32 to vector<2x16xf32>
    %28 = arith.mulf %27, %26 : vector<2x16xf32>
    %29 = arith.addf %24, %28 : vector<2x16xf32>
    %c2 = arith.constant 2 : index
    %c0_18 = arith.constant 0 : index
    %30 = vector.load %arg15[%c2, %c0_18] : memref<16x16xf32, #tpu.memory_space<vmem>>, vector<2x16xf32>
    tpu.vector_store %arg15[%c2, %c0_18], %22 {strides = array<i32>} : memref<16x16xf32, #tpu.memory_space<vmem>>, vector<2x16xf32>,
    %cst_19 = arith.constant 0.899999976 : f32
    %31 = vector.broadcast %cst_19 : f32 to vector<2x16xf32>
    %32 = arith.mulf %31, %22 : vector<2x16xf32>
    %cst_20 = arith.constant 9.99999809 : f32
    %33 = vector.broadcast %cst_20 : f32 to vector<2x16xf32>
    %34 = arith.mulf %33, %29 : vector<2x16xf32>
    %35 = arith.addf %32, %34 : vector<2x16xf32>
    %cst_21 = arith.constant 8.500000e-01 : f32
    %36 = vector.broadcast %cst_21 : f32 to vector<2x16xf32>
    %37 = arith.mulf %36, %29 : vector<2x16xf32>
    %c2_22 = arith.constant 2 : index
    %c0_23 = arith.constant 0 : index
    %c0_24 = arith.constant 0 : index
    %38 = vector.load %arg1[%c2_22, %c0_23, %c0_24] : memref<8x2x16xf32, #tpu.memory_space<vmem>>, vector<1x2x16xf32>
    %39 = vector.shape_cast %38 : vector<1x2x16xf32> to vector<2x16xf32>
    %cst_25 = arith.constant 6.66666794 : f32
    %40 = vector.broadcast %cst_25 : f32 to vector<2x16xf32>
    %41 = arith.mulf %40, %39 : vector<2x16xf32>
    %42 = arith.addf %37, %41 : vector<2x16xf32>
    %c4 = arith.constant 4 : index
    %c0_26 = arith.constant 0 : index
    %43 = vector.load %arg15[%c4, %c0_26] : memref<16x16xf32, #tpu.memory_space<vmem>>, vector<2x16xf32>
    tpu.vector_store %arg15[%c4, %c0_26], %35 {strides = array<i32>} : memref<16x16xf32, #tpu.memory_space<vmem>>, vector<2x16xf32>,
    %cst_27 = arith.constant 0.899999976 : f32
    %44 = vector.broadcast %cst_27 : f32 to vector<2x16xf32>
    %45 = arith.mulf %44, %35 : vector<2x16xf32>
    %cst_28 = arith.constant 9.99999809 : f32
    %46 = vector.broadcast %cst_28 : f32 to vector<2x16xf32>
    %47 = arith.mulf %46, %42 : vector<2x16xf32>
    %48 = arith.addf %45, %47 : vector<2x16xf32>
    %cst_29 = arith.constant 8.500000e-01 : f32
    %49 = vector.broadcast %cst_29 : f32 to vector<2x16xf32>
    %50 = arith.mulf %49, %42 : vector<2x16xf32>
    %c3 = arith.constant 3 : index
    %c0_30 = arith.constant 0 : index
    %c0_31 = arith.constant 0 : index
    %51 = vector.load %arg1[%c3, %c0_30, %c0_31] : memref<8x2x16xf32, #tpu.memory_space<vmem>>, vector<1x2x16xf32>
    %52 = vector.shape_cast %51 : vector<1x2x16xf32> to vector<2x16xf32>
    %cst_32 = arith.constant 6.66666794 : f32
    %53 = vector.broadcast %cst_32 : f32 to vector<2x16xf32>
    %54 = arith.mulf %53, %52 : vector<2x16xf32>
    %55 = arith.addf %50, %54 : vector<2x16xf32>
    %c6 = arith.constant 6 : index
    %c0_33 = arith.constant 0 : index
    %56 = vector.load %arg15[%c6, %c0_33] : memref<16x16xf32, #tpu.memory_space<vmem>>, vector<2x16xf32>
    tpu.vector_store %arg15[%c6, %c0_33], %48 {strides = array<i32>} : memref<16x16xf32, #tpu.memory_space<vmem>>, vector<2x16xf32>,
    %cst_34 = arith.constant 0.899999976 : f32
    %57 = vector.broadcast %cst_34 : f32 to vector<2x16xf32>
    %58 = arith.mulf %57, %48 : vector<2x16xf32>
    %cst_35 = arith.constant 9.99999809 : f32
    %59 = vector.broadcast %cst_35 : f32 to vector<2x16xf32>
    %60 = arith.mulf %59, %55 : vector<2x16xf32>
    %61 = arith.addf %58, %60 : vector<2x16xf32>
    %cst_36 = arith.constant 8.500000e-01 : f32
    %62 = vector.broadcast %cst_36 : f32 to vector<2x16xf32>
    %63 = arith.mulf %62, %55 : vector<2x16xf32>
    %c4_37 = arith.constant 4 : index
    %c0_38 = arith.constant 0 : index
    %c0_39 = arith.constant 0 : index
    %64 = vector.load %arg1[%c4_37, %c0_38, %c0_39] : memref<8x2x16xf32, #tpu.memory_space<vmem>>, vector<1x2x16xf32>
    %65 = vector.shape_cast %64 : vector<1x2x16xf32> to vector<2x16xf32>
    %cst_40 = arith.constant 6.66666794 : f32
    %66 = vector.broadcast %cst_40 : f32 to vector<2x16xf32>
    %67 = arith.mulf %66, %65 : vector<2x16xf32>
    %68 = arith.addf %63, %67 : vector<2x16xf32>
    %c8 = arith.constant 8 : index
    %c0_41 = arith.constant 0 : index
    %69 = vector.load %arg15[%c8, %c0_41] : memref<16x16xf32, #tpu.memory_space<vmem>>, vector<2x16xf32>
    tpu.vector_store %arg15[%c8, %c0_41], %61 {strides = array<i32>} : memref<16x16xf32, #tpu.memory_space<vmem>>, vector<2x16xf32>,
    %cst_42 = arith.constant 0.899999976 : f32
    %70 = vector.broadcast %cst_42 : f32 to vector<2x16xf32>
    %71 = arith.mulf %70, %61 : vector<2x16xf32>
    %cst_43 = arith.constant 9.99999809 : f32
    %72 = vector.broadcast %cst_43 : f32 to vector<2x16xf32>
    %73 = arith.mulf %72, %68 : vector<2x16xf32>
    %74 = arith.addf %71, %73 : vector<2x16xf32>
    %cst_44 = arith.constant 8.500000e-01 : f32
    %75 = vector.broadcast %cst_44 : f32 to vector<2x16xf32>
    %76 = arith.mulf %75, %68 : vector<2x16xf32>
    %c5 = arith.constant 5 : index
    %c0_45 = arith.constant 0 : index
    %c0_46 = arith.constant 0 : index
    %77 = vector.load %arg1[%c5, %c0_45, %c0_46] : memref<8x2x16xf32, #tpu.memory_space<vmem>>, vector<1x2x16xf32>
    %78 = vector.shape_cast %77 : vector<1x2x16xf32> to vector<2x16xf32>
    %cst_47 = arith.constant 6.66666794 : f32
    %79 = vector.broadcast %cst_47 : f32 to vector<2x16xf32>
    %80 = arith.mulf %79, %78 : vector<2x16xf32>
    %81 = arith.addf %76, %80 : vector<2x16xf32>
    %c10 = arith.constant 10 : index
    %c0_48 = arith.constant 0 : index
    %82 = vector.load %arg15[%c10, %c0_48] : memref<16x16xf32, #tpu.memory_space<vmem>>, vector<2x16xf32>
    tpu.vector_store %arg15[%c10, %c0_48], %74 {strides = array<i32>} : memref<16x16xf32, #tpu.memory_space<vmem>>, vector<2x16xf32>,
    %cst_49 = arith.constant 0.899999976 : f32
    %83 = vector.broadcast %cst_49 : f32 to vector<2x16xf32>
    %84 = arith.mulf %83, %74 : vector<2x16xf32>
    %cst_50 = arith.constant 9.99999809 : f32
    %85 = vector.broadcast %cst_50 : f32 to vector<2x16xf32>
    %86 = arith.mulf %85, %81 : vector<2x16xf32>
    %87 = arith.addf %84, %86 : vector<2x16xf32>
    %cst_51 = arith.constant 8.500000e-01 : f32
    %88 = vector.broadcast %cst_51 : f32 to vector<2x16xf32>
    %89 = arith.mulf %88, %81 : vector<2x16xf32>
    %c6_52 = arith.constant 6 : index
    %c0_53 = arith.constant 0 : index
    %c0_54 = arith.constant 0 : index
    %90 = vector.load %arg1[%c6_52, %c0_53, %c0_54] : memref<8x2x16xf32, #tpu.memory_space<vmem>>, vector<1x2x16xf32>
    %91 = vector.shape_cast %90 : vector<1x2x16xf32> to vector<2x16xf32>
    %cst_55 = arith.constant 6.66666794 : f32
    %92 = vector.broadcast %cst_55 : f32 to vector<2x16xf32>
    %93 = arith.mulf %92, %91 : vector<2x16xf32>
    %94 = arith.addf %89, %93 : vector<2x16xf32>
    %c12 = arith.constant 12 : index
    %c0_56 = arith.constant 0 : index
    %95 = vector.load %arg15[%c12, %c0_56] : memref<16x16xf32, #tpu.memory_space<vmem>>, vector<2x16xf32>
    tpu.vector_store %arg15[%c12, %c0_56], %87 {strides = array<i32>} : memref<16x16xf32, #tpu.memory_space<vmem>>, vector<2x16xf32>,
    %cst_57 = arith.constant 0.899999976 : f32
    %96 = vector.broadcast %cst_57 : f32 to vector<2x16xf32>
    %97 = arith.mulf %96, %87 : vector<2x16xf32>
    %cst_58 = arith.constant 9.99999809 : f32
    %98 = vector.broadcast %cst_58 : f32 to vector<2x16xf32>
    %99 = arith.mulf %98, %94 : vector<2x16xf32>
    %100 = arith.addf %97, %99 : vector<2x16xf32>
    %cst_59 = arith.constant 8.500000e-01 : f32
    %101 = vector.broadcast %cst_59 : f32 to vector<2x16xf32>
    %102 = arith.mulf %101, %94 : vector<2x16xf32>
    %c7 = arith.constant 7 : index
    %c0_60 = arith.constant 0 : index
    %c0_61 = arith.constant 0 : index
    %103 = vector.load %arg1[%c7, %c0_60, %c0_61] : memref<8x2x16xf32, #tpu.memory_space<vmem>>, vector<1x2x16xf32>
    %104 = vector.shape_cast %103 : vector<1x2x16xf32> to vector<2x16xf32>
    %cst_62 = arith.constant 6.66666794 : f32
    %105 = vector.broadcast %cst_62 : f32 to vector<2x16xf32>
    %106 = arith.mulf %105, %104 : vector<2x16xf32>
    %107 = arith.addf %102, %106 : vector<2x16xf32>
    %c14 = arith.constant 14 : index
    %c0_63 = arith.constant 0 : index
    %108 = vector.load %arg15[%c14, %c0_63] : memref<16x16xf32, #tpu.memory_space<vmem>>, vector<2x16xf32>
    tpu.vector_store %arg15[%c14, %c0_63], %100 {strides = array<i32>} : memref<16x16xf32, #tpu.memory_space<vmem>>, vector<2x16xf32>,
    %c0_64 = arith.constant 0 : index
    %c0_65 = arith.constant 0 : index
    %109 = vector.load %arg11[%c0_64, %c0_65] : memref<2x16xf32, #tpu.memory_space<vmem>>, vector<2x16xf32>
    tpu.vector_store %arg11[%c0_64, %c0_65], %100 {strides = array<i32>} : memref<2x16xf32, #tpu.memory_space<vmem>>, vector<2x16xf32>,
    %c0_66 = arith.constant 0 : index
    %c0_67 = arith.constant 0 : index
    %110 = vector.load %arg12[%c0_66, %c0_67] : memref<2x16xf32, #tpu.memory_space<vmem>>, vector<2x16xf32>
    tpu.vector_store %arg12[%c0_66, %c0_67], %107 {strides = array<i32>} : memref<2x16xf32, #tpu.memory_space<vmem>>, vector<2x16xf32>,
    %c0_68 = arith.constant 0 : index
    %c0_69 = arith.constant 0 : index
    %111 = vector.load %arg15[%c0_68, %c0_69] : memref<16x16xf32, #tpu.memory_space<vmem>>, vector<16x16xf32>
    %112 = arith.truncf %111 : vector<16x16xf32> to vector<16x16xbf16>
    %c0_70 = arith.constant 0 : index
    %c0_71 = arith.constant 0 : index
    %113 = vector.load %arg3[%c0_70, %c0_71] : memref<16x32xbf16, #tpu.memory_space<vmem>>, vector<16x32xbf16>
    %cst_72 = arith.constant dense<0.000000e+00> : vector<16x32xf32>
    %114 = tpu.matmul %112, %113, %cst_72 {dimension_numbers = #tpu.dot_dimension_numbers<[1], [0], [0], [1], [0, 0, 1, 1], [], []>} : vector<16x16xbf16>, vector<16x32xbf16>, vector<16x32xf32> -> vector<16x32xf32>
    %c0_73 = arith.constant 0 : index
    %c0_74 = arith.constant 0 : index
    %115 = vector.load %arg4[%c0_73, %c0_74] : memref<1x32xf32, #tpu.memory_space<vmem>>, vector<1x32xf32>
    %116 = vector.broadcast %115 : vector<1x32xf32> to vector<16x32xf32>
    %117 = arith.addf %114, %116 : vector<16x32xf32>
    %c0_75 = arith.constant 0 : index
    %c0_76 = arith.constant 0 : index
    %118 = vector.load %arg13[%c0_75, %c0_76] : memref<2x32xf32, #tpu.memory_space<vmem>>, vector<2x32xf32>
    %c0_77 = arith.constant 0 : index
    %c0_78 = arith.constant 0 : index
    %119 = vector.load %arg14[%c0_77, %c0_78] : memref<2x32xf32, #tpu.memory_space<vmem>>, vector<2x32xf32>
    %cst_79 = arith.constant 6.500000e-01 : f32
    %120 = vector.broadcast %cst_79 : f32 to vector<2x32xf32>
    %121 = arith.mulf %120, %118 : vector<2x32xf32>
    %cst_80 = arith.constant 1.000000e+00 : f32
    %122 = vector.broadcast %cst_80 : f32 to vector<2x32xf32>
    %123 = arith.mulf %122, %119 : vector<2x32xf32>
    %124 = arith.subf %121, %123 : vector<2x32xf32>
    %125 = vector.extract_strided_slice %117 {offsets = [0, 0], sizes = [2, 32], strides = [1, 1]} : vector<16x32xf32> to vector<2x32xf32>
    %126 = arith.addf %125, %124 : vector<2x32xf32>
    %c0_81 = arith.constant 0 : index
    %c0_82 = arith.constant 0 : index
    %c0_83 = arith.constant 0 : index
    %127 = vector.load %arg2[%c0_81, %c0_82, %c0_83] : memref<8x2x32xf32, #tpu.memory_space<vmem>>, vector<1x2x32xf32>
    %128 = vector.shape_cast %127 : vector<1x2x32xf32> to vector<2x32xf32>
    %129 = arith.addf %126, %128 : vector<2x32xf32>
    %cst_84 = arith.constant 0.000000e+00 : f32
    %130 = vector.broadcast %cst_84 : f32 to vector<2x32xf32>
    %131 = arith.cmpf ogt, %129, %130 : vector<2x32xf32>
    %132 = arith.extui %131 : vector<2x32xi1> to vector<2x32xi32>
    %133 = arith.sitofp %132 : vector<2x32xi32> to vector<2x32xf32>
    %c0_85 = arith.constant 0 : index
    %c0_86 = arith.constant 0 : index
    %c0_87 = arith.constant 0 : index
    %134 = vector.load %arg10[%c0_85, %c0_86, %c0_87] : memref<8x2x32xf32, #tpu.memory_space<vmem>>, vector<1x2x32xf32>
    %135 = vector.shape_cast %134 : vector<1x2x32xf32> to vector<2x32xf32>
    %136 = vector.shape_cast %129 : vector<2x32xf32> to vector<1x2x32xf32>
    tpu.vector_store %arg10[%c0_85, %c0_86, %c0_87], %136 {strides = array<i32>} : memref<8x2x32xf32, #tpu.memory_space<vmem>>, vector<1x2x32xf32>,
    %c0_88 = arith.constant 0 : index
    %c0_89 = arith.constant 0 : index
    %c0_90 = arith.constant 0 : index
    %137 = vector.load %arg9[%c0_88, %c0_89, %c0_90] : memref<8x2x32xf32, #tpu.memory_space<vmem>>, vector<1x2x32xf32>
    %138 = vector.shape_cast %137 : vector<1x2x32xf32> to vector<2x32xf32>
    %139 = vector.shape_cast %133 : vector<2x32xf32> to vector<1x2x32xf32>
    tpu.vector_store %arg9[%c0_88, %c0_89, %c0_90], %139 {strides = array<i32>} : memref<8x2x32xf32, #tpu.memory_space<vmem>>, vector<1x2x32xf32>,
    %cst_91 = arith.constant 6.500000e-01 : f32
    %140 = vector.broadcast %cst_91 : f32 to vector<2x32xf32>
    %141 = arith.mulf %140, %124 : vector<2x32xf32>
    %cst_92 = arith.constant 1.000000e+00 : f32
    %142 = vector.broadcast %cst_92 : f32 to vector<2x32xf32>
    %143 = arith.mulf %142, %133 : vector<2x32xf32>
    %144 = arith.subf %141, %143 : vector<2x32xf32>
    %145 = vector.extract_strided_slice %117 {offsets = [2, 0], sizes = [2, 32], strides = [1, 1]} : vector<16x32xf32> to vector<2x32xf32>
    %146 = arith.addf %145, %144 : vector<2x32xf32>
    %c1_93 = arith.constant 1 : index
    %c0_94 = arith.constant 0 : index
    %c0_95 = arith.constant 0 : index
    %147 = vector.load %arg2[%c1_93, %c0_94, %c0_95] : memref<8x2x32xf32, #tpu.memory_space<vmem>>, vector<1x2x32xf32>
    %148 = vector.shape_cast %147 : vector<1x2x32xf32> to vector<2x32xf32>
    %149 = arith.addf %146, %148 : vector<2x32xf32>
    %cst_96 = arith.constant 0.000000e+00 : f32
    %150 = vector.broadcast %cst_96 : f32 to vector<2x32xf32>
    %151 = arith.cmpf ogt, %149, %150 : vector<2x32xf32>
    %152 = arith.extui %151 : vector<2x32xi1> to vector<2x32xi32>
    %153 = arith.sitofp %152 : vector<2x32xi32> to vector<2x32xf32>
    %c1_97 = arith.constant 1 : index
    %c0_98 = arith.constant 0 : index
    %c0_99 = arith.constant 0 : index
    %154 = vector.load %arg10[%c1_97, %c0_98, %c0_99] : memref<8x2x32xf32, #tpu.memory_space<vmem>>, vector<1x2x32xf32>
    %155 = vector.shape_cast %154 : vector<1x2x32xf32> to vector<2x32xf32>
    %156 = vector.shape_cast %149 : vector<2x32xf32> to vector<1x2x32xf32>
    tpu.vector_store %arg10[%c1_97, %c0_98, %c0_99], %156 {strides = array<i32>} : memref<8x2x32xf32, #tpu.memory_space<vmem>>, vector<1x2x32xf32>,
    %c1_100 = arith.constant 1 : index
    %c0_101 = arith.constant 0 : index
    %c0_102 = arith.constant 0 : index
    %157 = vector.load %arg9[%c1_100, %c0_101, %c0_102] : memref<8x2x32xf32, #tpu.memory_space<vmem>>, vector<1x2x32xf32>
    %158 = vector.shape_cast %157 : vector<1x2x32xf32> to vector<2x32xf32>
    %159 = vector.shape_cast %153 : vector<2x32xf32> to vector<1x2x32xf32>
    tpu.vector_store %arg9[%c1_100, %c0_101, %c0_102], %159 {strides = array<i32>} : memref<8x2x32xf32, #tpu.memory_space<vmem>>, vector<1x2x32xf32>,
    %cst_103 = arith.constant 6.500000e-01 : f32
    %160 = vector.broadcast %cst_103 : f32 to vector<2x32xf32>
    %161 = arith.mulf %160, %144 : vector<2x32xf32>
    %cst_104 = arith.constant 1.000000e+00 : f32
    %162 = vector.broadcast %cst_104 : f32 to vector<2x32xf32>
    %163 = arith.mulf %162, %153 : vector<2x32xf32>
    %164 = arith.subf %161, %163 : vector<2x32xf32>
    %165 = vector.extract_strided_slice %117 {offsets = [4, 0], sizes = [2, 32], strides = [1, 1]} : vector<16x32xf32> to vector<2x32xf32>
    %166 = arith.addf %165, %164 : vector<2x32xf32>
    %c2_105 = arith.constant 2 : index
    %c0_106 = arith.constant 0 : index
    %c0_107 = arith.constant 0 : index
    %167 = vector.load %arg2[%c2_105, %c0_106, %c0_107] : memref<8x2x32xf32, #tpu.memory_space<vmem>>, vector<1x2x32xf32>
    %168 = vector.shape_cast %167 : vector<1x2x32xf32> to vector<2x32xf32>
    %169 = arith.addf %166, %168 : vector<2x32xf32>
    %cst_108 = arith.constant 0.000000e+00 : f32
    %170 = vector.broadcast %cst_108 : f32 to vector<2x32xf32>
    %171 = arith.cmpf ogt, %169, %170 : vector<2x32xf32>
    %172 = arith.extui %171 : vector<2x32xi1> to vector<2x32xi32>
    %173 = arith.sitofp %172 : vector<2x32xi32> to vector<2x32xf32>
    %c2_109 = arith.constant 2 : index
    %c0_110 = arith.constant 0 : index
    %c0_111 = arith.constant 0 : index
    %174 = vector.load %arg10[%c2_109, %c0_110, %c0_111] : memref<8x2x32xf32, #tpu.memory_space<vmem>>, vector<1x2x32xf32>
    %175 = vector.shape_cast %174 : vector<1x2x32xf32> to vector<2x32xf32>
    %176 = vector.shape_cast %169 : vector<2x32xf32> to vector<1x2x32xf32>
    tpu.vector_store %arg10[%c2_109, %c0_110, %c0_111], %176 {strides = array<i32>} : memref<8x2x32xf32, #tpu.memory_space<vmem>>, vector<1x2x32xf32>,
    %c2_112 = arith.constant 2 : index
    %c0_113 = arith.constant 0 : index
    %c0_114 = arith.constant 0 : index
    %177 = vector.load %arg9[%c2_112, %c0_113, %c0_114] : memref<8x2x32xf32, #tpu.memory_space<vmem>>, vector<1x2x32xf32>
    %178 = vector.shape_cast %177 : vector<1x2x32xf32> to vector<2x32xf32>
    %179 = vector.shape_cast %173 : vector<2x32xf32> to vector<1x2x32xf32>
    tpu.vector_store %arg9[%c2_112, %c0_113, %c0_114], %179 {strides = array<i32>} : memref<8x2x32xf32, #tpu.memory_space<vmem>>, vector<1x2x32xf32>,
    %cst_115 = arith.constant 6.500000e-01 : f32
    %180 = vector.broadcast %cst_115 : f32 to vector<2x32xf32>
    %181 = arith.mulf %180, %164 : vector<2x32xf32>
    %cst_116 = arith.constant 1.000000e+00 : f32
    %182 = vector.broadcast %cst_116 : f32 to vector<2x32xf32>
    %183 = arith.mulf %182, %173 : vector<2x32xf32>
    %184 = arith.subf %181, %183 : vector<2x32xf32>
    %185 = vector.extract_strided_slice %117 {offsets = [6, 0], sizes = [2, 32], strides = [1, 1]} : vector<16x32xf32> to vector<2x32xf32>
    %186 = arith.addf %185, %184 : vector<2x32xf32>
    %c3_117 = arith.constant 3 : index
    %c0_118 = arith.constant 0 : index
    %c0_119 = arith.constant 0 : index
    %187 = vector.load %arg2[%c3_117, %c0_118, %c0_119] : memref<8x2x32xf32, #tpu.memory_space<vmem>>, vector<1x2x32xf32>
    %188 = vector.shape_cast %187 : vector<1x2x32xf32> to vector<2x32xf32>
    %189 = arith.addf %186, %188 : vector<2x32xf32>
    %cst_120 = arith.constant 0.000000e+00 : f32
    %190 = vector.broadcast %cst_120 : f32 to vector<2x32xf32>
    %191 = arith.cmpf ogt, %189, %190 : vector<2x32xf32>
    %192 = arith.extui %191 : vector<2x32xi1> to vector<2x32xi32>
    %193 = arith.sitofp %192 : vector<2x32xi32> to vector<2x32xf32>
    %c3_121 = arith.constant 3 : index
    %c0_122 = arith.constant 0 : index
    %c0_123 = arith.constant 0 : index
    %194 = vector.load %arg10[%c3_121, %c0_122, %c0_123] : memref<8x2x32xf32, #tpu.memory_space<vmem>>, vector<1x2x32xf32>
    %195 = vector.shape_cast %194 : vector<1x2x32xf32> to vector<2x32xf32>
    %196 = vector.shape_cast %189 : vector<2x32xf32> to vector<1x2x32xf32>
    tpu.vector_store %arg10[%c3_121, %c0_122, %c0_123], %196 {strides = array<i32>} : memref<8x2x32xf32, #tpu.memory_space<vmem>>, vector<1x2x32xf32>,
    %c3_124 = arith.constant 3 : index
    %c0_125 = arith.constant 0 : index
    %c0_126 = arith.constant 0 : index
    %197 = vector.load %arg9[%c3_124, %c0_125, %c0_126] : memref<8x2x32xf32, #tpu.memory_space<vmem>>, vector<1x2x32xf32>
    %198 = vector.shape_cast %197 : vector<1x2x32xf32> to vector<2x32xf32>
    %199 = vector.shape_cast %193 : vector<2x32xf32> to vector<1x2x32xf32>
    tpu.vector_store %arg9[%c3_124, %c0_125, %c0_126], %199 {strides = array<i32>} : memref<8x2x32xf32, #tpu.memory_space<vmem>>, vector<1x2x32xf32>,
    %cst_127 = arith.constant 6.500000e-01 : f32
    %200 = vector.broadcast %cst_127 : f32 to vector<2x32xf32>
    %201 = arith.mulf %200, %184 : vector<2x32xf32>
    %cst_128 = arith.constant 1.000000e+00 : f32
    %202 = vector.broadcast %cst_128 : f32 to vector<2x32xf32>
    %203 = arith.mulf %202, %193 : vector<2x32xf32>
    %204 = arith.subf %201, %203 : vector<2x32xf32>
    %205 = vector.extract_strided_slice %117 {offsets = [8, 0], sizes = [2, 32], strides = [1, 1]} : vector<16x32xf32> to vector<2x32xf32>
    %206 = arith.addf %205, %204 : vector<2x32xf32>
    %c4_129 = arith.constant 4 : index
    %c0_130 = arith.constant 0 : index
    %c0_131 = arith.constant 0 : index
    %207 = vector.load %arg2[%c4_129, %c0_130, %c0_131] : memref<8x2x32xf32, #tpu.memory_space<vmem>>, vector<1x2x32xf32>
    %208 = vector.shape_cast %207 : vector<1x2x32xf32> to vector<2x32xf32>
    %209 = arith.addf %206, %208 : vector<2x32xf32>
    %cst_132 = arith.constant 0.000000e+00 : f32
    %210 = vector.broadcast %cst_132 : f32 to vector<2x32xf32>
    %211 = arith.cmpf ogt, %209, %210 : vector<2x32xf32>
    %212 = arith.extui %211 : vector<2x32xi1> to vector<2x32xi32>
    %213 = arith.sitofp %212 : vector<2x32xi32> to vector<2x32xf32>
    %c4_133 = arith.constant 4 : index
    %c0_134 = arith.constant 0 : index
    %c0_135 = arith.constant 0 : index
    %214 = vector.load %arg10[%c4_133, %c0_134, %c0_135] : memref<8x2x32xf32, #tpu.memory_space<vmem>>, vector<1x2x32xf32>
    %215 = vector.shape_cast %214 : vector<1x2x32xf32> to vector<2x32xf32>
    %216 = vector.shape_cast %209 : vector<2x32xf32> to vector<1x2x32xf32>
    tpu.vector_store %arg10[%c4_133, %c0_134, %c0_135], %216 {strides = array<i32>} : memref<8x2x32xf32, #tpu.memory_space<vmem>>, vector<1x2x32xf32>,
    %c4_136 = arith.constant 4 : index
    %c0_137 = arith.constant 0 : index
    %c0_138 = arith.constant 0 : index
    %217 = vector.load %arg9[%c4_136, %c0_137, %c0_138] : memref<8x2x32xf32, #tpu.memory_space<vmem>>, vector<1x2x32xf32>
    %218 = vector.shape_cast %217 : vector<1x2x32xf32> to vector<2x32xf32>
    %219 = vector.shape_cast %213 : vector<2x32xf32> to vector<1x2x32xf32>
    tpu.vector_store %arg9[%c4_136, %c0_137, %c0_138], %219 {strides = array<i32>} : memref<8x2x32xf32, #tpu.memory_space<vmem>>, vector<1x2x32xf32>,
    %cst_139 = arith.constant 6.500000e-01 : f32
    %220 = vector.broadcast %cst_139 : f32 to vector<2x32xf32>
    %221 = arith.mulf %220, %204 : vector<2x32xf32>
    %cst_140 = arith.constant 1.000000e+00 : f32
    %222 = vector.broadcast %cst_140 : f32 to vector<2x32xf32>
    %223 = arith.mulf %222, %213 : vector<2x32xf32>
    %224 = arith.subf %221, %223 : vector<2x32xf32>
    %225 = vector.extract_strided_slice %117 {offsets = [10, 0], sizes = [2, 32], strides = [1, 1]} : vector<16x32xf32> to vector<2x32xf32>
    %226 = arith.addf %225, %224 : vector<2x32xf32>
    %c5_141 = arith.constant 5 : index
    %c0_142 = arith.constant 0 : index
    %c0_143 = arith.constant 0 : index
    %227 = vector.load %arg2[%c5_141, %c0_142, %c0_143] : memref<8x2x32xf32, #tpu.memory_space<vmem>>, vector<1x2x32xf32>
    %228 = vector.shape_cast %227 : vector<1x2x32xf32> to vector<2x32xf32>
    %229 = arith.addf %226, %228 : vector<2x32xf32>
    %cst_144 = arith.constant 0.000000e+00 : f32
    %230 = vector.broadcast %cst_144 : f32 to vector<2x32xf32>
    %231 = arith.cmpf ogt, %229, %230 : vector<2x32xf32>
    %232 = arith.extui %231 : vector<2x32xi1> to vector<2x32xi32>
    %233 = arith.sitofp %232 : vector<2x32xi32> to vector<2x32xf32>
    %c5_145 = arith.constant 5 : index
    %c0_146 = arith.constant 0 : index
    %c0_147 = arith.constant 0 : index
    %234 = vector.load %arg10[%c5_145, %c0_146, %c0_147] : memref<8x2x32xf32, #tpu.memory_space<vmem>>, vector<1x2x32xf32>
    %235 = vector.shape_cast %234 : vector<1x2x32xf32> to vector<2x32xf32>
    %236 = vector.shape_cast %229 : vector<2x32xf32> to vector<1x2x32xf32>
    tpu.vector_store %arg10[%c5_145, %c0_146, %c0_147], %236 {strides = array<i32>} : memref<8x2x32xf32, #tpu.memory_space<vmem>>, vector<1x2x32xf32>,
    %c5_148 = arith.constant 5 : index
    %c0_149 = arith.constant 0 : index
    %c0_150 = arith.constant 0 : index
    %237 = vector.load %arg9[%c5_148, %c0_149, %c0_150] : memref<8x2x32xf32, #tpu.memory_space<vmem>>, vector<1x2x32xf32>
    %238 = vector.shape_cast %237 : vector<1x2x32xf32> to vector<2x32xf32>
    %239 = vector.shape_cast %233 : vector<2x32xf32> to vector<1x2x32xf32>
    tpu.vector_store %arg9[%c5_148, %c0_149, %c0_150], %239 {strides = array<i32>} : memref<8x2x32xf32, #tpu.memory_space<vmem>>, vector<1x2x32xf32>,
    %cst_151 = arith.constant 6.500000e-01 : f32
    %240 = vector.broadcast %cst_151 : f32 to vector<2x32xf32>
    %241 = arith.mulf %240, %224 : vector<2x32xf32>
    %cst_152 = arith.constant 1.000000e+00 : f32
    %242 = vector.broadcast %cst_152 : f32 to vector<2x32xf32>
    %243 = arith.mulf %242, %233 : vector<2x32xf32>
    %244 = arith.subf %241, %243 : vector<2x32xf32>
    %245 = vector.extract_strided_slice %117 {offsets = [12, 0], sizes = [2, 32], strides = [1, 1]} : vector<16x32xf32> to vector<2x32xf32>
    %246 = arith.addf %245, %244 : vector<2x32xf32>
    %c6_153 = arith.constant 6 : index
    %c0_154 = arith.constant 0 : index
    %c0_155 = arith.constant 0 : index
    %247 = vector.load %arg2[%c6_153, %c0_154, %c0_155] : memref<8x2x32xf32, #tpu.memory_space<vmem>>, vector<1x2x32xf32>
    %248 = vector.shape_cast %247 : vector<1x2x32xf32> to vector<2x32xf32>
    %249 = arith.addf %246, %248 : vector<2x32xf32>
    %cst_156 = arith.constant 0.000000e+00 : f32
    %250 = vector.broadcast %cst_156 : f32 to vector<2x32xf32>
    %251 = arith.cmpf ogt, %249, %250 : vector<2x32xf32>
    %252 = arith.extui %251 : vector<2x32xi1> to vector<2x32xi32>
    %253 = arith.sitofp %252 : vector<2x32xi32> to vector<2x32xf32>
    %c6_157 = arith.constant 6 : index
    %c0_158 = arith.constant 0 : index
    %c0_159 = arith.constant 0 : index
    %254 = vector.load %arg10[%c6_157, %c0_158, %c0_159] : memref<8x2x32xf32, #tpu.memory_space<vmem>>, vector<1x2x32xf32>
    %255 = vector.shape_cast %254 : vector<1x2x32xf32> to vector<2x32xf32>
    %256 = vector.shape_cast %249 : vector<2x32xf32> to vector<1x2x32xf32>
    tpu.vector_store %arg10[%c6_157, %c0_158, %c0_159], %256 {strides = array<i32>} : memref<8x2x32xf32, #tpu.memory_space<vmem>>, vector<1x2x32xf32>,
    %c6_160 = arith.constant 6 : index
    %c0_161 = arith.constant 0 : index
    %c0_162 = arith.constant 0 : index
    %257 = vector.load %arg9[%c6_160, %c0_161, %c0_162] : memref<8x2x32xf32, #tpu.memory_space<vmem>>, vector<1x2x32xf32>
    %258 = vector.shape_cast %257 : vector<1x2x32xf32> to vector<2x32xf32>
    %259 = vector.shape_cast %253 : vector<2x32xf32> to vector<1x2x32xf32>
    tpu.vector_store %arg9[%c6_160, %c0_161, %c0_162], %259 {strides = array<i32>} : memref<8x2x32xf32, #tpu.memory_space<vmem>>, vector<1x2x32xf32>,
    %cst_163 = arith.constant 6.500000e-01 : f32
    %260 = vector.broadcast %cst_163 : f32 to vector<2x32xf32>
    %261 = arith.mulf %260, %244 : vector<2x32xf32>
    %cst_164 = arith.constant 1.000000e+00 : f32
    %262 = vector.broadcast %cst_164 : f32 to vector<2x32xf32>
    %263 = arith.mulf %262, %253 : vector<2x32xf32>
    %264 = arith.subf %261, %263 : vector<2x32xf32>
    %265 = vector.extract_strided_slice %117 {offsets = [14, 0], sizes = [2, 32], strides = [1, 1]} : vector<16x32xf32> to vector<2x32xf32>
    %266 = arith.addf %265, %264 : vector<2x32xf32>
    %c7_165 = arith.constant 7 : index
    %c0_166 = arith.constant 0 : index
    %c0_167 = arith.constant 0 : index
    %267 = vector.load %arg2[%c7_165, %c0_166, %c0_167] : memref<8x2x32xf32, #tpu.memory_space<vmem>>, vector<1x2x32xf32>
    %268 = vector.shape_cast %267 : vector<1x2x32xf32> to vector<2x32xf32>
    %269 = arith.addf %266, %268 : vector<2x32xf32>
    %cst_168 = arith.constant 0.000000e+00 : f32
    %270 = vector.broadcast %cst_168 : f32 to vector<2x32xf32>
    %271 = arith.cmpf ogt, %269, %270 : vector<2x32xf32>
    %272 = arith.extui %271 : vector<2x32xi1> to vector<2x32xi32>
    %273 = arith.sitofp %272 : vector<2x32xi32> to vector<2x32xf32>
    %c7_169 = arith.constant 7 : index
    %c0_170 = arith.constant 0 : index
    %c0_171 = arith.constant 0 : index
    %274 = vector.load %arg10[%c7_169, %c0_170, %c0_171] : memref<8x2x32xf32, #tpu.memory_space<vmem>>, vector<1x2x32xf32>
    %275 = vector.shape_cast %274 : vector<1x2x32xf32> to vector<2x32xf32>
    %276 = vector.shape_cast %269 : vector<2x32xf32> to vector<1x2x32xf32>
    tpu.vector_store %arg10[%c7_169, %c0_170, %c0_171], %276 {strides = array<i32>} : memref<8x2x32xf32, #tpu.memory_space<vmem>>, vector<1x2x32xf32>,
    %c7_172 = arith.constant 7 : index
    %c0_173 = arith.constant 0 : index
    %c0_174 = arith.constant 0 : index
    %277 = vector.load %arg9[%c7_172, %c0_173, %c0_174] : memref<8x2x32xf32, #tpu.memory_space<vmem>>, vector<1x2x32xf32>
    %278 = vector.shape_cast %277 : vector<1x2x32xf32> to vector<2x32xf32>
    %279 = vector.shape_cast %273 : vector<2x32xf32> to vector<1x2x32xf32>
    tpu.vector_store %arg9[%c7_172, %c0_173, %c0_174], %279 {strides = array<i32>} : memref<8x2x32xf32, #tpu.memory_space<vmem>>, vector<1x2x32xf32>,
    %c0_175 = arith.constant 0 : index
    %c0_176 = arith.constant 0 : index
    %280 = vector.load %arg13[%c0_175, %c0_176] : memref<2x32xf32, #tpu.memory_space<vmem>>, vector<2x32xf32>
    tpu.vector_store %arg13[%c0_175, %c0_176], %264 {strides = array<i32>} : memref<2x32xf32, #tpu.memory_space<vmem>>, vector<2x32xf32>,
    %c0_177 = arith.constant 0 : index
    %c0_178 = arith.constant 0 : index
    %281 = vector.load %arg14[%c0_177, %c0_178] : memref<2x32xf32, #tpu.memory_space<vmem>>, vector<2x32xf32>
    tpu.vector_store %arg14[%c0_177, %c0_178], %273 {strides = array<i32>} : memref<2x32xf32, #tpu.memory_space<vmem>>, vector<2x32xf32>,
    return
  }
  func.func @transform_0(%arg0: i32) -> (i32, i32, i32) {
    %c0_i32 = arith.constant 0 : i32
    %c0_i32_0 = arith.constant 0 : i32
    %c0_i32_1 = arith.constant 0 : i32
    return %arg0, %c0_i32, %c0_i32_0 : i32, i32, i32
  }
  func.func @transform_1(%arg0: i32) -> (i32, i32, i32) {
    %c0_i32 = arith.constant 0 : i32
    %c0_i32_0 = arith.constant 0 : i32
    %c0_i32_1 = arith.constant 0 : i32
    return %arg0, %c0_i32, %c0_i32_0 : i32, i32, i32
  }
  func.func @transform_2(%arg0: i32) -> (i32, i32) {
    %c0_i32 = arith.constant 0 : i32
    %c0_i32_0 = arith.constant 0 : i32
    %c0_i32_1 = arith.constant 0 : i32
    return %c0_i32, %c0_i32_0 : i32, i32
  }
  func.func @transform_3(%arg0: i32) -> (i32, i32) {
    %c0_i32 = arith.constant 0 : i32
    %c0_i32_0 = arith.constant 0 : i32
    %c0_i32_1 = arith.constant 0 : i32
    return %c0_i32, %c0_i32_0 : i32, i32
  }
  func.func @transform_4(%arg0: i32) -> (i32, i32) {
    %c0_i32 = arith.constant 0 : i32
    %c0_i32_0 = arith.constant 0 : i32
    %c0_i32_1 = arith.constant 0 : i32
    return %c0_i32, %c0_i32_0 : i32, i32
  }
  func.func @transform_5(%arg0: i32) -> (i32, i32) {
    %c0_i32 = arith.constant 0 : i32
    %c0_i32_0 = arith.constant 0 : i32
    %c0_i32_1 = arith.constant 0 : i32
    return %c0_i32, %c0_i32_0 : i32, i32
  }
  func.func @transform_6(%arg0: i32) -> (i32, i32) {
    %c0_i32 = arith.constant 0 : i32
    %c0_i32_0 = arith.constant 0 : i32
    %c0_i32_1 = arith.constant 0 : i32
    return %c0_i32, %c0_i32_0 : i32, i32
  }
  func.func @transform_7(%arg0: i32) -> (i32, i32) {
    %c0_i32 = arith.constant 0 : i32
    %c0_i32_0 = arith.constant 0 : i32
    %c0_i32_1 = arith.constant 0 : i32
    return %c0_i32, %c0_i32_0 : i32, i32
  }
  func.func @transform_8(%arg0: i32) -> (i32, i32, i32) {
    %c0_i32 = arith.constant 0 : i32
    %c0_i32_0 = arith.constant 0 : i32
    %c0_i32_1 = arith.constant 0 : i32
    return %arg0, %c0_i32, %c0_i32_0 : i32, i32, i32
  }
  func.func @transform_9(%arg0: i32) -> (i32, i32, i32) {
    %c0_i32 = arith.constant 0 : i32
    %c0_i32_0 = arith.constant 0 : i32
    %c0_i32_1 = arith.constant 0 : i32
    return %arg0, %c0_i32, %c0_i32_0 : i32, i32, i32
  }
  func.func @transform_10(%arg0: i32) -> (i32, i32) {
    %c0_i32 = arith.constant 0 : i32
    %c0_i32_0 = arith.constant 0 : i32
    %c0_i32_1 = arith.constant 0 : i32
    return %c0_i32, %c0_i32_0 : i32, i32
  }
  func.func @transform_11(%arg0: i32) -> (i32, i32) {
    %c0_i32 = arith.constant 0 : i32
    %c0_i32_0 = arith.constant 0 : i32
    %c0_i32_1 = arith.constant 0 : i32
    return %c0_i32, %c0_i32_0 : i32, i32
  }
  func.func @transform_12(%arg0: i32) -> (i32, i32) {
    %c0_i32 = arith.constant 0 : i32
    %c0_i32_0 = arith.constant 0 : i32
    %c0_i32_1 = arith.constant 0 : i32
    return %c0_i32, %c0_i32_0 : i32, i32
  }
  func.func @transform_13(%arg0: i32) -> (i32, i32) {
    %c0_i32 = arith.constant 0 : i32
    %c0_i32_0 = arith.constant 0 : i32
    %c0_i32_1 = arith.constant 0 : i32
    return %c0_i32, %c0_i32_0 : i32, i32
  }
}

</mosaic_0001>

<llo_original>
// kernel: tpu_custom_call.1
$region0: #{tpu_custom_call.1}
  #allocation0 [shape = 'u32[]', space=smem, size = 0x4, offset = 0x4, fixed_abs, tag = 'smem constant byte address 0x4 - core index']
  #allocation1 [shape = 'u32[72,128]{1,0:T(1,128)}', space=vmem, size = 0x9000, scoped, tag = 'internal scratch']
  #allocation2 [shape = 'f32[16,16]{1,0:T(8,128)}', space=vmem, size = 0x2000, scoped, tag = 'scratch operand']
  %s0 = inlined_call_operand.hbm [shape: f32[8,2,16], index: 0, kind: input, shape index: {}]
  %s1 = inlined_call_operand.hbm [shape: f32[8,2,32], index: 1, kind: input, shape index: {}]
  %s2 = inlined_call_operand.hbm [shape: bf16[16,32], index: 2, kind: input, shape index: {}]
  %s3 = inlined_call_operand.hbm [shape: f32[1,32], index: 3, kind: input, shape index: {}]
  %s4 = inlined_call_operand.vmem [shape: f32[2,16], index: 4, kind: input, shape index: {}]
  %s5 = inlined_call_operand.vmem [shape: f32[2,16], index: 5, kind: input, shape index: {}]
  %s6 = inlined_call_operand.hbm [shape: f32[2,32], index: 6, kind: input, shape index: {}]
  %s7 = inlined_call_operand.vmem [shape: f32[2,32], index: 7, kind: input, shape index: {}]
  %s8 = inlined_call_operand.hbm [shape: f32[8,2,32], index: 8, kind: output, shape index: {0}]
  %s9 = inlined_call_operand.hbm [shape: f32[8,2,32], index: 9, kind: output, shape index: {1}]
  %s10 = inlined_call_operand.hbm [shape: f32[2,16], index: 10, kind: output, shape index: {2}]
  %s11 = inlined_call_operand.hbm [shape: f32[2,16], index: 11, kind: output, shape index: {3}]
  %s12 = inlined_call_operand.hbm [shape: f32[2,32], index: 12, kind: output, shape index: {4}]
  %s13 = inlined_call_operand.hbm [shape: f32[2,32], index: 13, kind: output, shape index: {5}]
  %14 = xla_tuple %s8, %s9, %s10, %s11, %s12, %s13
  %s15 = sld [smem:[#allocation0]]
  $region106: #{tpu_custom_call.1} parent=0
    _
  %s17 = ssub.s32 1, %s15
  %s18 = scalar_select 0, %s17, %s15
  $region1: #{tpu_custom_call.1} parent=0
    #allocation3 [shape = 'u8[8192]{0}', space=vmem, size = 0x2000, scoped, tag = 'input window, operand 0, single buffered']
    #allocation4 [shape = 's32[1]{0}', space=sflag, size = 0x4, scoped, tag = 'scoped memory for tpu_custom_call.1']
    #allocation5 [shape = 's32[1]{0}', space=sflag, size = 0x4, scoped, tag = 'scoped memory for tpu_custom_call.1']
    #allocation6 [shape = 'u8[8192]{0}', space=vmem, size = 0x2000, scoped, tag = 'input window, operand 1, single buffered']
    #allocation7 [shape = 's32[1]{0}', space=sflag, size = 0x4, scoped, tag = 'scoped memory for tpu_custom_call.1']
    #allocation8 [shape = 'u8[4096]{0}', space=vmem, size = 0x1000, scoped, tag = 'input window, operand 2, single buffered']
    #allocation9 [shape = 'u8[512]{0}', space=vmem, size = 0x400, scoped, tag = 'input window, operand 3, single buffered']
    #allocation10 [shape = 's32[1]{0}', space=sflag, size = 0x4, scoped, tag = 'scoped memory for tpu_custom_call.1']
    #allocation11 [shape = 'u8[1024]{0}', space=vmem, size = 0x400, scoped, tag = 'input window, operand 6, single buffered']
    #allocation12 [shape = 'u8[8192]{0}', space=vmem, size = 0x2000, scoped, tag = 'output window, operand 0, single buffered']
    #allocation13 [shape = 'u8[8192]{0}', space=vmem, size = 0x2000, scoped, tag = 'output window, operand 1, single buffered']
    #allocation14 [shape = 's32[1]{0}', space=sflag, size = 0x4, scoped, tag = 'scoped memory for tpu_custom_call.1']
    #allocation15 [shape = 'u8[1024]{0}', space=vmem, size = 0x400, scoped, tag = 'output window, operand 2, single buffered']
    #allocation16 [shape = 'u8[1024]{0}', space=vmem, size = 0x400, scoped, tag = 'output window, operand 3, single buffered']
    #allocation17 [shape = 's32[1]{0}', space=sflag, size = 0x4, scoped, tag = 'scoped memory for tpu_custom_call.1']
    #allocation18 [shape = 'u8[1024]{0}', space=vmem, size = 0x400, scoped, tag = 'output window, operand 4, single buffered']
    #allocation19 [shape = 'u8[1024]{0}', space=vmem, size = 0x400, scoped, tag = 'output window, operand 5, single buffered']
    #allocation20 [shape = 's32[1]{0}', space=sflag, size = 0x4, scoped, tag = 'scoped memory for tpu_custom_call.1']
    %19 = vsyncpa [#allocation4], 0
    %20 = vsyncpa [#allocation7], 0
    %21 = vsyncpa [#allocation10], 0
    %22 = vsyncpa [#allocation5], 0
    %23 = vsyncpa [#allocation14], 0
    %24 = vsyncpa [#allocation17], 0
    %25 = vsyncpa [#allocation20], 0
    // Predicated region
    $region2: #{tpu_custom_call.1} parent=1 // pred_check
      _
    $region3: #{tpu_custom_call.1} parent=1 // pred_check_branch
      %27 = sbr.rel (0) target = $region5
    $region4: #{tpu_custom_call.1} parent=1 // pred_region
      %29 = vsyncadd [#allocation4], 0
      %s30 = sshll.u32 %s0, 4
      %s31 = int_to_ptr.hbm [resolvable:$true] %s30
      %s32 = sshll.u32 [#allocation3], 4
      %s33 = int_to_ptr.vmem [resolvable:$true] %s32
      %38 = dma.hbm_to_vmem [thread:$0]  %s31, 256, %s33, [#allocation4], 32, 32, 2
    $region5: #{tpu_custom_call.1} parent=1 // pred_fallthru
      _
    // Predicated region
    $region6: #{tpu_custom_call.1} parent=1 // pred_check
      _
    $region7: #{tpu_custom_call.1} parent=1 // pred_check_branch
      %40 = sbr.rel (0) target = $region9
    $region8: #{tpu_custom_call.1} parent=1 // pred_region
      %42 = vsyncadd [#allocation7], 0
      %s43 = sshll.u32 %s1, 4
      %s44 = int_to_ptr.hbm [resolvable:$true] %s43
      %s45 = sshll.u32 [#allocation6], 4
      %s46 = int_to_ptr.vmem [resolvable:$true] %s45
      %51 = dma.hbm_to_vmem [thread:$0]  %s44, 256, %s46, [#allocation7], 32, 32, 2
    $region9: #{tpu_custom_call.1} parent=1 // pred_fallthru
      _
    // Predicated region
    $region10: #{tpu_custom_call.1} parent=1 // pred_check
      _
    $region11: #{tpu_custom_call.1} parent=1 // pred_check_branch
      %53 = sbr.rel (0) target = $region13
    $region12: #{tpu_custom_call.1} parent=1 // pred_region
      %55 = vsyncadd [#allocation7], 0
      %s56 = sshll.u32 %s2, 4
      %s57 = int_to_ptr.hbm [resolvable:$true] %s56
      %s58 = sshll.u32 [#allocation8], 4
      %s59 = int_to_ptr.vmem [resolvable:$true] %s58
      %64 = dma.hbm_to_vmem [thread:$0]  %s57, 128, %s59, [#allocation7], 64, 64, 4
    $region13: #{tpu_custom_call.1} parent=1 // pred_fallthru
      _
    // Predicated region
    $region14: #{tpu_custom_call.1} parent=1 // pred_check
      _
    $region15: #{tpu_custom_call.1} parent=1 // pred_check_branch
      %66 = sbr.rel (0) target = $region17
    $region16: #{tpu_custom_call.1} parent=1 // pred_region
      %68 = vsyncadd [#allocation10], 0
      %s70 = sshll.u32 %s3, 4
      %s71 = int_to_ptr.hbm [resolvable:$true] %s70
      %s72 = sshll.u32 [#allocation9], 4
      %s73 = int_to_ptr.vmem [resolvable:$true] %s72
      %75 = dma.hbm_to_vmem [thread:$0]  %s71, 16, %s73, [#allocation10]
    $region17: #{tpu_custom_call.1} parent=1 // pred_fallthru
      _
    // Predicated region
    $region18: #{tpu_custom_call.1} parent=1 // pred_check
      _
    $region19: #{tpu_custom_call.1} parent=1 // pred_check_branch
      %77 = sbr.rel (0) target = $region21
    $region20: #{tpu_custom_call.1} parent=1 // pred_region
      _
    $region21: #{tpu_custom_call.1} parent=1 // pred_fallthru
      _
    // Predicated region
    $region22: #{tpu_custom_call.1} parent=1 // pred_check
      _
    $region23: #{tpu_custom_call.1} parent=1 // pred_check_branch
      %79 = sbr.rel (0) target = $region25
    $region24: #{tpu_custom_call.1} parent=1 // pred_region
      _
    $region25: #{tpu_custom_call.1} parent=1 // pred_fallthru
      _
    // Predicated region
    $region26: #{tpu_custom_call.1} parent=1 // pred_check
      _
    $region27: #{tpu_custom_call.1} parent=1 // pred_check_branch
      %81 = sbr.rel (0) target = $region29
    $region28: #{tpu_custom_call.1} parent=1 // pred_region
      %83 = vsyncadd [#allocation10], 0
      %s85 = sshll.u32 %s6, 4
      %s86 = int_to_ptr.hbm [resolvable:$true] %s85
      %s87 = sshll.u32 [#allocation11], 4
      %s88 = int_to_ptr.vmem [resolvable:$true] %s87
      %90 = dma.hbm_to_vmem [thread:$0]  %s86, 32, %s88, [#allocation10]
    $region29: #{tpu_custom_call.1} parent=1 // pred_fallthru
      _
    // Predicated region
    $region30: #{tpu_custom_call.1} parent=1 // pred_check
      _
    $region31: #{tpu_custom_call.1} parent=1 // pred_check_branch
      %92 = sbr.rel (0) target = $region33
    $region32: #{tpu_custom_call.1} parent=1 // pred_region
      _
    $region33: #{tpu_custom_call.1} parent=1 // pred_fallthru
      _
    // Predicated region
    $region34: #{tpu_custom_call.1} parent=1 // pred_check
      _
    $region35: #{tpu_custom_call.1} parent=1 // pred_check_branch
      %94 = sbr.rel (0) target = $region37
    $region36: #{tpu_custom_call.1} parent=1 // pred_region
      %96 = dma.done [#allocation4], 256
    $region37: #{tpu_custom_call.1} parent=1 // pred_fallthru
      _
    // Predicated region
    $region38: #{tpu_custom_call.1} parent=1 // pred_check
      _
    $region39: #{tpu_custom_call.1} parent=1 // pred_check_branch
      %98 = sbr.rel (0) target = $region41
    $region40: #{tpu_custom_call.1} parent=1 // pred_region
      %100 = dma.done [#allocation7], 256
    $region41: #{tpu_custom_call.1} parent=1 // pred_fallthru
      _
    // Predicated region
    $region42: #{tpu_custom_call.1} parent=1 // pred_check
      _
    $region43: #{tpu_custom_call.1} parent=1 // pred_check_branch
      %102 = sbr.rel (0) target = $region45
    $region44: #{tpu_custom_call.1} parent=1 // pred_region
      %104 = dma.done [#allocation7], 128
    $region45: #{tpu_custom_call.1} parent=1 // pred_fallthru
      _
    // Predicated region
    $region46: #{tpu_custom_call.1} parent=1 // pred_check
      _
    $region47: #{tpu_custom_call.1} parent=1 // pred_check_branch
      %106 = sbr.rel (0) target = $region49
    $region48: #{tpu_custom_call.1} parent=1 // pred_region
      %108 = dma.done [#allocation10], 16
    $region49: #{tpu_custom_call.1} parent=1 // pred_fallthru
      _
    // Predicated region
    $region50: #{tpu_custom_call.1} parent=1 // pred_check
      _
    $region51: #{tpu_custom_call.1} parent=1 // pred_check_branch
      %110 = sbr.rel (0) target = $region53
    $region52: #{tpu_custom_call.1} parent=1 // pred_region
      %112 = dma.done [#allocation10], 32
    $region53: #{tpu_custom_call.1} parent=1 // pred_fallthru
      _
    %p114 = scmp.eq.s32.totalorder 0, 0
    // Predicated region
    $region54: #{tpu_custom_call.1} parent=1 // pred_check
      %p115 = pneg %p114
    $region55: #{tpu_custom_call.1} parent=1 // pred_check_branch
      %117 = sbr.rel (%p115) target = $region57
    $region56: #{tpu_custom_call.1} parent=1 // pred_region
      %v118 = vld [vmem:[%s4] sm:$0x3]
      %vm119 = vcmask 123904
      %120 = vst.msk [vmem:[#allocation15] sm:$0x3] %vm119, %v118
      %v121 = vld [vmem:[%s5] sm:$0x3]
      %122 = vst.msk [vmem:[#allocation16] sm:$0x3] %vm119, %v121
      %v123 = vld [vmem:[#allocation11] sm:$0x3]
      %vm124 = vcmask 254976
      %125 = vst.msk [vmem:[#allocation18] sm:$0x3] %vm124, %v123
      %v126 = vld [vmem:[%s7] sm:$0x3]
      %127 = vst.msk [vmem:[#allocation19] sm:$0x3] %vm124, %v126
    $region57: #{tpu_custom_call.1} parent=1 // pred_fallthru
      _
    %v128 = vld [vmem:[#allocation15] sm:$0x3]
    %v129 = vld [vmem:[#allocation16] sm:$0x3]
    %v130 = vmul.f32 %v128, 0.9
    %v131 = vmul.f32 %v129, 9.999998
    %v132 = vadd.f32 %v130, %v131
    %v133 = vmul.f32 %v129, 0.85
    %v134 = vld [vmem:[#allocation3] sm:$0x3]
    %v135 = vmul.f32 %v134, 6.666668
    %v136 = vadd.f32 %v133, %v135
    %vm137 = vcmask 123904
    %138 = vst.msk [vmem:[#allocation2] sm:$0x3] %vm137, %v132
    %v139 = vmul.f32 %v132, 0.9
    %v140 = vmul.f32 %v136, 9.999998
    %v141 = vadd.f32 %v139, %v140
    %v142 = vmul.f32 %v136, 0.85
    %s143 = scalar_lea.vmem [#allocation3], 2
    %v144 = vld [vmem:[%s143] sm:$0x3]
    %v145 = vmul.f32 %v144, 6.666668
    %v146 = vadd.f32 %v142, %v145
    %147 = vst.msk [vmem:[#allocation2 + $0x2] sm:$0x3] %vm137, %v141
    %v148 = vmul.f32 %v141, 0.9
    %v149 = vmul.f32 %v146, 9.999998
    %v150 = vadd.f32 %v148, %v149
    %v151 = vmul.f32 %v146, 0.85
    %s152 = scalar_lea.vmem [#allocation3], 4
    %v153 = vld [vmem:[%s152] sm:$0x3]
    %v154 = vmul.f32 %v153, 6.666668
    %v155 = vadd.f32 %v151, %v154
    %156 = vst.msk [vmem:[#allocation2 + $0x4] sm:$0x3] %vm137, %v150
    %v157 = vmul.f32 %v150, 0.9
    %v158 = vmul.f32 %v155, 9.999998
    %v159 = vadd.f32 %v157, %v158
    %v160 = vmul.f32 %v155, 0.85
    %s161 = scalar_lea.vmem [#allocation3], 6
    %v162 = vld [vmem:[%s161] sm:$0x3]
    %v163 = vmul.f32 %v162, 6.666668
    %v164 = vadd.f32 %v160, %v163
    %165 = vst.msk [vmem:[#allocation2 + $0x6] sm:$0x3] %vm137, %v159
    %v166 = vmul.f32 %v159, 0.9
    %v167 = vmul.f32 %v164, 9.999998
    %v168 = vadd.f32 %v166, %v167
    %v169 = vmul.f32 %v164, 0.85
    %s170 = scalar_lea.vmem [#allocation3], 8
    %v171 = vld [vmem:[%s170] sm:$0x3]
    %v172 = vmul.f32 %v171, 6.666668
    %v173 = vadd.f32 %v169, %v172
    %174 = vst.msk [vmem:[#allocation2 + $0x8] sm:$0x3] %vm137, %v168
    %v175 = vmul.f32 %v168, 0.9
    %v176 = vmul.f32 %v173, 9.999998
    %v177 = vadd.f32 %v175, %v176
    %v178 = vmul.f32 %v173, 0.85
    %s179 = scalar_lea.vmem [#allocation3], 10
    %v180 = vld [vmem:[%s179] sm:$0x3]
    %v181 = vmul.f32 %v180, 6.666668
    %v182 = vadd.f32 %v178, %v181
    %183 = vst.msk [vmem:[#allocation2 + $0xa] sm:$0x3] %vm137, %v177
    %v184 = vmul.f32 %v177, 0.9
    %v185 = vmul.f32 %v182, 9.999998
    %v186 = vadd.f32 %v184, %v185
    %v187 = vmul.f32 %v182, 0.85
    %s188 = scalar_lea.vmem [#allocation3], 12
    %v189 = vld [vmem:[%s188] sm:$0x3]
    %v190 = vmul.f32 %v189, 6.666668
    %v191 = vadd.f32 %v187, %v190
    %192 = vst.msk [vmem:[#allocation2 + $0xc] sm:$0x3] %vm137, %v186
    %v193 = vmul.f32 %v186, 0.9
    %v194 = vmul.f32 %v191, 9.999998
    %v195 = vadd.f32 %v193, %v194
    %v196 = vmul.f32 %v191, 0.85
    %s197 = scalar_lea.vmem [#allocation3], 14
    %v198 = vld [vmem:[%s197] sm:$0x3]
    %v199 = vmul.f32 %v198, 6.666668
    %v200 = vadd.f32 %v196, %v199
    %201 = vst.msk [vmem:[#allocation2 + $0xe] sm:$0x3] %vm137, %v195
    %202 = vst.msk [vmem:[#allocation15] sm:$0x3] %vm137, %v195
    %203 = vst.msk [vmem:[#allocation16] sm:$0x3] %vm137, %v200
    %v204 = vld [vmem:[#allocation2] sm:$0xff]
    %v205 = vld [vmem:[#allocation2 + $0x8] sm:$0xff]
    %v206 = vpack.c.bf16 %v205, %v204
    %v207 = vld [vmem:[#allocation8] sm:$0xf]
    %v208 = vld [vmem:[#allocation8 + $0x4] sm:$0xf]
    %v209 = vld [vmem:[#allocation9] sm:$0x1]
    %v211 = vperm.slane %v209, 0
    %v215 = vunpack.c.l.b16 %v207
    %v216 = vunpack.c.l.b16 %v208
    %v217 = vpack.c.b16 %v216, %v215
    %vm219 = vcmask 130048
    %v221 = vsel %vm219, %v206, 0
    %223 = vmatpush.bf16.msra.mxu0 0
    %224 = vmatpush.bf16.msra.mxu0 0
    %225 = vmatpush.bf16.msra.mxu0 0
    %226 = vmatpush.bf16.msra.mxu0 0
    %227 = vmatpush.bf16.msra.mxu0 0
    %228 = vmatpush.bf16.msra.mxu0 0
    %229 = vmatpush.bf16.msra.mxu0 0
    %230 = vmatpush.bf16.msra.mxu0 %v217
    %231 = vmatmul.bf16.gmra.mxu0 %v221
    %v232 = vpop.f32.mrf.mxu0
    %v233 = vadd.f32 %v211, %v232
    %v234 = vpop.f32.mrf.mxu0
    %v235 = vadd.f32 %v211, %v234
    %236 = vdwg.mxu0
    %v237 = vld [vmem:[#allocation18] sm:$0x3]
    %v238 = vld [vmem:[#allocation19] sm:$0x3]
    %v239 = vmul.f32 %v237, 0.65
    %v240 = vsub.f32 %v239, %v238
    %v241 = vadd.f32 %v233, %v240
    %v242 = vld [vmem:[#allocation6] sm:$0x3]
    %v243 = vadd.f32 %v241, %v242
    %vm244 = vcmp.gt.f32.partialorder %v243, 0.0
    %v245 = vsel %vm244, 1, 0
    %v246 = vcvt.s32.f32 %v245
    %vm247 = vcmask 254976
    %248 = vst.msk [vmem:[#allocation13] sm:$0x3] %vm247, %v243
    %249 = vst.msk [vmem:[#allocation12] sm:$0x3] %vm247, %v246
    %v250 = vmul.f32 %v240, 0.65
    %v251 = vsub.f32 %v250, %v246
    %v253 = vrot.slane %v251, 6
    %v255 = vadd.f32 %v233, %v253
    %s256 = scalar_lea.vmem [#allocation6], 2
    %v257 = vld [vmem:[%s256] sm:$0x3]
    %v259 = vrot.slane %v257, 6
    %v261 = vadd.f32 %v255, %v259
    %vm262 = vcmp.gt.f32.partialorder %v261, 0.0
    %v263 = vsel %vm262, 1, 0
    %v264 = vcvt.s32.f32 %v263
    %s265 = scalar_lea.vmem [#allocation13], 2
    %vm266 = vcmask 257026
    %267 = vst.msk [vmem:[%s265 - $0x2] sm:$0xc] %vm266, %v261
    %s268 = scalar_lea.vmem [#allocation12], 2
    %269 = vst.msk [vmem:[%s268 - $0x2] sm:$0xc] %vm266, %v264
    %v270 = vmul.f32 %v251, 0.65
    %v272 = vrot.slane %v264, 2
    %v274 = vsub.f32 %v270, %v272
    %v276 = vrot.slane %v274, 4
    %v278 = vadd.f32 %v233, %v276
    %s279 = scalar_lea.vmem [#allocation6], 4
    %v280 = vld [vmem:[%s279] sm:$0x3]
    %v282 = vrot.slane %v280, 4
    %v284 = vadd.f32 %v278, %v282
    %vm285 = vcmp.gt.f32.partialorder %v284, 0.0
    %v286 = vsel %vm285, 1, 0
    %v287 = vcvt.s32.f32 %v286
    %s288 = scalar_lea.vmem [#allocation13], 4
    %vm289 = vcmask 259076
    %290 = vst.msk [vmem:[%s288 - $0x4] sm:$0x30] %vm289, %v284
    %s291 = scalar_lea.vmem [#allocation12], 4
    %292 = vst.msk [vmem:[%s291 - $0x4] sm:$0x30] %vm289, %v287
    %v293 = vmul.f32 %v274, 0.65
    %v295 = vrot.slane %v287, 4
    %v297 = vsub.f32 %v293, %v295
    %v299 = vrot.slane %v297, 2
    %v301 = vadd.f32 %v233, %v299
    %s302 = scalar_lea.vmem [#allocation6], 6
    %v303 = vld [vmem:[%s302] sm:$0x3]
    %v305 = vrot.slane %v303, 2
    %v307 = vadd.f32 %v301, %v305
    %vm308 = vcmp.gt.f32.partialorder %v307, 0.0
    %v309 = vsel %vm308, 1, 0
    %v310 = vcvt.s32.f32 %v309
    %s311 = scalar_lea.vmem [#allocation13], 6
    %vm312 = vcmask 261126
    %313 = vst.msk [vmem:[%s311 - $0x6] sm:$0xc0] %vm312, %v307
    %s314 = scalar_lea.vmem [#allocation12], 6
    %315 = vst.msk [vmem:[%s314 - $0x6] sm:$0xc0] %vm312, %v310
    %v316 = vmul.f32 %v297, 0.65
    %v318 = vrot.slane %v310, 6
    %v320 = vsub.f32 %v316, %v318
    %v321 = vadd.f32 %v235, %v320
    %s322 = scalar_lea.vmem [#allocation6], 8
    %v323 = vld [vmem:[%s322] sm:$0x3]
    %v324 = vadd.f32 %v321, %v323
    %vm325 = vcmp.gt.f32.partialorder %v324, 0.0
    %v326 = vsel %vm325, 1, 0
    %v327 = vcvt.s32.f32 %v326
    %s328 = scalar_lea.vmem [#allocation13], 8
    %329 = vst.msk [vmem:[%s328] sm:$0x3] %vm247, %v324
    %s330 = scalar_lea.vmem [#allocation12], 8
    %331 = vst.msk [vmem:[%s330] sm:$0x3] %vm247, %v327
    %v332 = vmul.f32 %v320, 0.65
    %v333 = vsub.f32 %v332, %v327
    %v335 = vrot.slane %v333, 6
    %v337 = vadd.f32 %v235, %v335
    %s338 = scalar_lea.vmem [#allocation6], 10
    %v339 = vld [vmem:[%s338] sm:$0x3]
    %v341 = vrot.slane %v339, 6
    %v343 = vadd.f32 %v337, %v341
    %vm344 = vcmp.gt.f32.partialorder %v343, 0.0
    %v345 = vsel %vm344, 1, 0
    %v346 = vcvt.s32.f32 %v345
    %s347 = scalar_lea.vmem [#allocation13], 10
    %348 = vst.msk [vmem:[%s347 - $0x2] sm:$0xc] %vm266, %v343
    %s349 = scalar_lea.vmem [#allocation12], 10
    %350 = vst.msk [vmem:[%s349 - $0x2] sm:$0xc] %vm266, %v346
    %v351 = vmul.f32 %v333, 0.65
    %v353 = vrot.slane %v346, 2
    %v355 = vsub.f32 %v351, %v353
    %v357 = vrot.slane %v355, 4
    %v359 = vadd.f32 %v235, %v357
    %s360 = scalar_lea.vmem [#allocation6], 12
    %v361 = vld [vmem:[%s360] sm:$0x3]
    %v363 = vrot.slane %v361, 4
    %v365 = vadd.f32 %v359, %v363
    %vm366 = vcmp.gt.f32.partialorder %v365, 0.0
    %v367 = vsel %vm366, 1, 0
    %v368 = vcvt.s32.f32 %v367
    %s369 = scalar_lea.vmem [#allocation13], 12
    %370 = vst.msk [vmem:[%s369 - $0x4] sm:$0x30] %vm289, %v365
    %s371 = scalar_lea.vmem [#allocation12], 12
    %372 = vst.msk [vmem:[%s371 - $0x4] sm:$0x30] %vm289, %v368
    %v373 = vmul.f32 %v355, 0.65
    %v375 = vrot.slane %v368, 4
    %v377 = vsub.f32 %v373, %v375
    %v379 = vrot.slane %v377, 2
    %v381 = vadd.f32 %v235, %v379
    %s382 = scalar_lea.vmem [#allocation6], 14
    %v383 = vld [vmem:[%s382] sm:$0x3]
    %v385 = vrot.slane %v383, 2
    %v387 = vadd.f32 %v381, %v385
    %vm388 = vcmp.gt.f32.partialorder %v387, 0.0
    %v389 = vsel %vm388, 1, 0
    %v390 = vcvt.s32.f32 %v389
    %s391 = scalar_lea.vmem [#allocation13], 14
    %392 = vst.msk [vmem:[%s391 - $0x6] sm:$0xc0] %vm312, %v387
    %s393 = scalar_lea.vmem [#allocation12], 14
    %394 = vst.msk [vmem:[%s393 - $0x6] sm:$0xc0] %vm312, %v390
    %395 = vst.msk [vmem:[#allocation18] sm:$0x3] %vm247, %v377
    %396 = vst.msk [vmem:[#allocation19 - $0x6] sm:$0xc0] %vm312, %v390
    // Predicated region
    $region58: #{tpu_custom_call.1} parent=1 // pred_check
      _
    $region59: #{tpu_custom_call.1} parent=1 // pred_check_branch
      %398 = sbr.rel (0) target = $region61
    $region60: #{tpu_custom_call.1} parent=1 // pred_region
      %400 = vsyncadd [#allocation5], 0
      %s401 = sshll.u32 [#allocation12], 4
      %s402 = int_to_ptr.vmem [resolvable:$true] %s401
      %s403 = sshll.u32 %s8, 4
      %s404 = int_to_ptr.hbm [resolvable:$true] %s403
      %409 = dma.vmem_to_hbm [thread:$0]  %s402, 256, %s404, [#allocation5], 32, 32, 2
    $region61: #{tpu_custom_call.1} parent=1 // pred_fallthru
      _
    // Predicated region
    $region62: #{tpu_custom_call.1} parent=1 // pred_check
      _
    $region63: #{tpu_custom_call.1} parent=1 // pred_check_branch
      %411 = sbr.rel (0) target = $region65
    $region64: #{tpu_custom_call.1} parent=1 // pred_region
      %413 = vsyncadd [#allocation14], 0
      %s414 = sshll.u32 [#allocation13], 4
      %s415 = int_to_ptr.vmem [resolvable:$true] %s414
      %s416 = sshll.u32 %s9, 4
      %s417 = int_to_ptr.hbm [resolvable:$true] %s416
      %422 = dma.vmem_to_hbm [thread:$0]  %s415, 256, %s417, [#allocation14], 32, 32, 2
    $region65: #{tpu_custom_call.1} parent=1 // pred_fallthru
      _
    // Predicated region
    $region66: #{tpu_custom_call.1} parent=1 // pred_check
      _
    $region67: #{tpu_custom_call.1} parent=1 // pred_check_branch
      %424 = sbr.rel (0) target = $region69
    $region68: #{tpu_custom_call.1} parent=1 // pred_region
      %426 = vsyncadd [#allocation14], 0
      %s428 = sshll.u32 [#allocation15], 4
      %s429 = int_to_ptr.vmem [resolvable:$true] %s428
      %s430 = sshll.u32 %s10, 4
      %s431 = int_to_ptr.hbm [resolvable:$true] %s430
      %433 = dma.vmem_to_hbm [thread:$0]  %s429, 32, %s431, [#allocation14]
    $region69: #{tpu_custom_call.1} parent=1 // pred_fallthru
      _
    // Predicated region
    $region70: #{tpu_custom_call.1} parent=1 // pred_check
      _
    $region71: #{tpu_custom_call.1} parent=1 // pred_check_branch
      %435 = sbr.rel (0) target = $region73
    $region72: #{tpu_custom_call.1} parent=1 // pred_region
      %437 = vsyncadd [#allocation17], 0
      %s439 = sshll.u32 [#allocation16], 4
      %s440 = int_to_ptr.vmem [resolvable:$true] %s439
      %s441 = sshll.u32 %s11, 4
      %s442 = int_to_ptr.hbm [resolvable:$true] %s441
      %444 = dma.vmem_to_hbm [thread:$0]  %s440, 32, %s442, [#allocation17]
    $region73: #{tpu_custom_call.1} parent=1 // pred_fallthru
      _
    // Predicated region
    $region74: #{tpu_custom_call.1} parent=1 // pred_check
      _
    $region75: #{tpu_custom_call.1} parent=1 // pred_check_branch
      %446 = sbr.rel (0) target = $region77
    $region76: #{tpu_custom_call.1} parent=1 // pred_region
      %448 = vsyncadd [#allocation17], 0
      %s450 = sshll.u32 [#allocation18], 4
      %s451 = int_to_ptr.vmem [resolvable:$true] %s450
      %s452 = sshll.u32 %s12, 4
      %s453 = int_to_ptr.hbm [resolvable:$true] %s452
      %455 = dma.vmem_to_hbm [thread:$0]  %s451, 32, %s453, [#allocation17]
    $region77: #{tpu_custom_call.1} parent=1 // pred_fallthru
      _
    // Predicated region
    $region78: #{tpu_custom_call.1} parent=1 // pred_check
      _
    $region79: #{tpu_custom_call.1} parent=1 // pred_check_branch
      %457 = sbr.rel (0) target = $region81
    $region80: #{tpu_custom_call.1} parent=1 // pred_region
      %459 = vsyncadd [#allocation20], 0
      %s461 = sshll.u32 [#allocation19], 4
      %s462 = int_to_ptr.vmem [resolvable:$true] %s461
      %s463 = sshll.u32 %s13, 4
      %s464 = int_to_ptr.hbm [resolvable:$true] %s463
      %466 = dma.vmem_to_hbm [thread:$0]  %s462, 32, %s464, [#allocation20]
    $region81: #{tpu_custom_call.1} parent=1 // pred_fallthru
      _
    // Predicated region
    $region82: #{tpu_custom_call.1} parent=1 // pred_check
      _
    $region83: #{tpu_custom_call.1} parent=1 // pred_check_branch
      %468 = sbr.rel (0) target = $region85
    $region84: #{tpu_custom_call.1} parent=1 // pred_region
      %470 = dma.done [#allocation5], 256
    $region85: #{tpu_custom_call.1} parent=1 // pred_fallthru
      _
    // Predicated region
    $region86: #{tpu_custom_call.1} parent=1 // pred_check
      _
    $region87: #{tpu_custom_call.1} parent=1 // pred_check_branch
      %472 = sbr.rel (0) target = $region89
    $region88: #{tpu_custom_call.1} parent=1 // pred_region
      %474 = dma.done [#allocation14], 256
    $region89: #{tpu_custom_call.1} parent=1 // pred_fallthru
      _
    // Predicated region
    $region90: #{tpu_custom_call.1} parent=1 // pred_check
      _
    $region91: #{tpu_custom_call.1} parent=1 // pred_check_branch
      %476 = sbr.rel (0) target = $region93
    $region92: #{tpu_custom_call.1} parent=1 // pred_region
      %478 = dma.done [#allocation14], 32
    $region93: #{tpu_custom_call.1} parent=1 // pred_fallthru
      _
    // Predicated region
    $region94: #{tpu_custom_call.1} parent=1 // pred_check
      _
    $region95: #{tpu_custom_call.1} parent=1 // pred_check_branch
      %480 = sbr.rel (0) target = $region97
    $region96: #{tpu_custom_call.1} parent=1 // pred_region
      %482 = dma.done [#allocation17], 32
    $region97: #{tpu_custom_call.1} parent=1 // pred_fallthru
      _
    // Predicated region
    $region98: #{tpu_custom_call.1} parent=1 // pred_check
      _
    $region99: #{tpu_custom_call.1} parent=1 // pred_check_branch
      %484 = sbr.rel (0) target = $region101
    $region100: #{tpu_custom_call.1} parent=1 // pred_region
      %486 = dma.done [#allocation17], 32
    $region101: #{tpu_custom_call.1} parent=1 // pred_fallthru
      _
    // Predicated region
    $region102: #{tpu_custom_call.1} parent=1 // pred_check
      _
    $region103: #{tpu_custom_call.1} parent=1 // pred_check_branch
      %488 = sbr.rel (0) target = $region105
    $region104: #{tpu_custom_call.1} parent=1 // pred_region
      %490 = dma.done [#allocation20], 32
    $region105: #{tpu_custom_call.1} parent=1 // pred_fallthru
      _
    %491 = vsyncpa [#allocation4], 1
    %492 = vsyncpa [#allocation7], 1
    %493 = vsyncpa [#allocation10], 1
    %494 = vsyncpa [#allocation5], 1
    %495 = vsyncpa [#allocation14], 1
    %496 = vsyncpa [#allocation17], 1
    %497 = vsyncpa [#allocation20], 1

</llo_original>
